<compile_context>
chip_gen: v7x
topology: tpu7x:2x2x1
jax: 0.10.0
libtpu: 0.0.40
codegen_flags: <defaults>
</compile_context>

<pallas_src>
import functools

import jax
import jax.numpy as jnp
from jax.experimental import pallas as pl
from jax.experimental.pallas import tpu as pltpu

BN_EPS = 1e-5
LEAKY_SLOPE = 0.2
MAX_TM = 512                      # max lane-tile (multiple of 128)
VMEM_LIMIT = 32 * 1024 * 1024     # sized for v7x (64 MiB physical VMEM)


# ----------------------------- Pallas kernels ------------------------------
def _gemm_bias_stats_kernel(p_ref, w_ref, b_ref, y_ref, stats_ref, *, tm, m_real):
    """y(N,TM) = W(N,K) @ patches(K,TM) + b ; emit per-tile sum / sumsq."""
    i = pl.program_id(0)
    y = jnp.dot(w_ref[...], p_ref[...], preferred_element_type=jnp.float32)
    y = y + b_ref[...]
    y_ref[...] = y
    # Mask the zero-padded M columns so the batch statistics are exact.
    col = i * tm + jax.lax.broadcasted_iota(jnp.int32, y.shape, 1)
    yv = jnp.where(col < m_real, y, 0.0)
    s1 = jnp.sum(yv, axis=1, keepdims=True)        # (N, 1)
    s2 = jnp.sum(yv * yv, axis=1, keepdims=True)   # (N, 1)
    st = jnp.concatenate([s1, s2], axis=1)         # (N, 2)
    stats_ref[...] = st.reshape(1, *st.shape)


def _bn_lrelu_kernel(y_ref, scale_ref, shift_ref, o_ref):
    """Folded BatchNorm affine + LeakyReLU(0.2); f32 math, bf16 store."""
    y = y_ref[...] * scale_ref[...] + shift_ref[...]
    o_ref[...] = jnp.where(y >= 0, y, LEAKY_SLOPE * y).astype(o_ref.dtype)


def _gemm_bias_tanh_kernel(p_ref, w_ref, b_ref, o_ref):
    y = jnp.dot(w_ref[...], p_ref[...], preferred_element_type=jnp.float32)
    o_ref[...] = jnp.tanh(y + b_ref[...])


# ------------------------------- JAX glue ----------------------------------
def _choose_tm(m, max_tm=MAX_TM):
    """Largest lane tile (multiple of 128, <= max_tm) with minimal padding."""
    m128 = -(-m // 128) * 128
    if m128 <= max_tm:
        return m128
    best_tm, best_pad = 128, (-m) % 128
    for tm in range(256, max_tm + 1, 128):
        pad = (-m) % tm
        if pad <= best_pad:
            best_tm, best_pad = tm, pad
    return best_tm


def _patches_t(x, T):
    """Transposed im2col: (C*T*T, B*Qh*Qw); rows (ci,uh,uw), cols (b,qh,qw)."""
    B, C, H, W = x.shape
    xp = jnp.pad(x, ((0, 0), (0, 0), (T - 1, T - 1), (T - 1, T - 1)))
    Qh, Qw = H + T - 1, W + T - 1
    cols = []
    for uh in range(T):
        for uw in range(T):
            cols.append(xp[:, :, uh:uh + Qh, uw:uw + Qw])
    p = jnp.stack(cols, axis=0).reshape(T, T, B, C, Qh, Qw)
    p = jnp.transpose(p, (3, 0, 1, 2, 4, 5))       # (C, T, T, B, Qh, Qw)
    return p.reshape(C * T * T, B * Qh * Qw), Qh, Qw


def _weight_t(W, s):
    """Sub-pixel weight matrix, transposed: (s*s*C_out, C_in*T*T).

    Wt[(rh,rw,co), (ci,uh,uw)] = W[ci, co, (T-1-uh)*s + rh, (T-1-uw)*s + rw]
    """
    C_in, C_out, k, _ = W.shape
    T = k // s
    Wr = W.reshape(C_in, C_out, T, s, T, s)        # kh = th*s + rh
    Wr = Wr[:, :, ::-1, :, ::-1, :]                # th -> uh = T-1-th
    Wt = jnp.transpose(Wr, (3, 5, 1, 0, 2, 4))     # (rh, rw, co, ci, uh, uw)
    return Wt.reshape(s * s * C_out, C_in * T * T)


def decoder_layer(x, W, b, gamma, beta, stride, k, last):
    # x: (B, C_in, H, W) NCHW; W: (C_in, C_out, k, k) (PyTorch ConvTranspose2d)
    assert k % stride == 0, "sub-pixel decomposition requires k % stride == 0"
    B = x.shape[0]
    C_out = W.shape[1]
    s, T = stride, k // stride

    patches, Qh, Qw = _patches_t(x.astype(jnp.bfloat16), T)    # (K, M) bf16
    K, M = patches.shape
    wt = _weight_t(W, s).astype(jnp.bfloat16)                   # (N, K) bf16
    N = wt.shape[0]                                             # s*s*C_out
    b_vec = jnp.tile(b, s * s).reshape(N, 1).astype(jnp.float32)

    TM = _choose_tm(M)
    M_pad = -(-M // TM) * TM
    G = M_pad // TM
    patches = jnp.pad(patches, ((0, 0), (0, M_pad - M)))

    cparams = pltpu.CompilerParams(
        dimension_semantics=("parallel",), vmem_limit_bytes=VMEM_LIMIT)
    gemm_in_specs = [
        pl.BlockSpec((K, TM), lambda i: (0, i)),   # patches: tiled along M
        pl.BlockSpec((N, K), lambda i: (0, 0)),    # weights: VMEM-resident
        pl.BlockSpec((N, 1), lambda i: (0, 0)),    # bias:    VMEM-resident
    ]
    y_spec = pl.BlockSpec((N, TM), lambda i: (0, i))

    if last:
        y_t = pl.pallas_call(
            _gemm_bias_tanh_kernel,
            grid=(G,),
            in_specs=gemm_in_specs,
            out_specs=y_spec,
            out_shape=jax.ShapeDtypeStruct((N, M_pad), jnp.float32),
            compiler_params=cparams,
        )(patches, wt, b_vec)
    else:
        kern = functools.partial(_gemm_bias_stats_kernel, tm=TM, m_real=M)
        y_raw, stats = pl.pallas_call(
            kern,
            grid=(G,),
            in_specs=gemm_in_specs,
            out_specs=(y_spec, pl.BlockSpec((1, N, 2), lambda i: (i, 0, 0))),
            out_shape=(jax.ShapeDtypeStruct((N, M_pad), jnp.float32),
                       jax.ShapeDtypeStruct((G, N, 2), jnp.float32)),
            compiler_params=cparams,
        )(patches, wt, b_vec)

        # Finalize batch stats per *output channel*: reduce over grid tiles
        # and over the s*s sub-pixel residues that share the same channel.
        st = stats.sum(axis=0).reshape(s * s, C_out, 2).sum(axis=0)  # (C_out,2)
        count = float(M * s * s)                    # == B * H_out * W_out
        mean = st[:, 0] / count
        var = st[:, 1] / count - mean * mean        # biased, like BatchNorm2d
        scale_c = gamma * jax.lax.rsqrt(var + BN_EPS)
        shift_c = beta - mean * scale_c
        scale = jnp.tile(scale_c, s * s).reshape(N, 1)
        shift = jnp.tile(shift_c, s * s).reshape(N, 1)

        y_t = pl.pallas_call(
            _bn_lrelu_kernel,
            grid=(G,),
            in_specs=[y_spec,
                      pl.BlockSpec((N, 1), lambda i: (0, 0)),
                      pl.BlockSpec((N, 1), lambda i: (0, 0))],
            out_specs=y_spec,
            out_shape=jax.ShapeDtypeStruct((N, M_pad), jnp.bfloat16),
            compiler_params=cparams,
        )(y_raw, scale, shift)

    # Drop M padding; pixel-shuffle (N=(rh,rw,co), M=(b,qh,qw)) -> NCHW.
    y = y_t[:, :M].reshape(s, s, C_out, B, Qh, Qw)
    y = jnp.transpose(y, (3, 2, 4, 0, 5, 1))        # (B, co, qh, rh, qw, rw)
    return y.reshape(B, C_out, Qh * s, Qw * s)


def decoder_forward(x, params, cfg):
    n = cfg["transpose_bn_blocks"]
    for i in range(n):
        W, b, gamma, beta = params[i]
        x = decoder_layer(x, W, b, gamma, beta,
                          cfg["transpose_kernel_strides"][i],
                          cfg["transpose_kernel_size"][i],
                          last=(i == n - 1))
    return x


# ------------------------- pure-JAX reference ------------------------------
def _convt_ref(x, W, b, s):
    # Match the kernel pipeline's bf16 GEMM inputs (f32 accumulation).
    x = x.astype(jnp.bfloat16).astype(jnp.float32)
    W = W.astype(jnp.bfloat16).astype(jnp.float32)
    B, Ci, H, Wd = x.shape
    _, Co, k, _ = W.shape
    Ho, Wo = (H - 1) * s + k, (Wd - 1) * s + k
    out = jnp.zeros((B, Co, Ho, Wo), jnp.float32)
    for kh in range(k):
        for kw in range(k):
            contrib = jnp.einsum('nchw,cd->ndhw', x, W[:, :, kh, kw])
            out = out.at[:, :, kh:kh + (H - 1) * s + 1:s,
                         kw:kw + (Wd - 1) * s + 1:s].add(contrib)
    return out + b[None, :, None, None]


def decoder_ref(x, params, cfg):
    n = cfg["transpose_bn_blocks"]
    for i in range(n):
        W, b, gamma, beta = params[i]
        x = _convt_ref(x, W, b, cfg["transpose_kernel_strides"][i])
        if i < n - 1:
            mean = jnp.mean(x, axis=(0, 2, 3), keepdims=True)
            var = jnp.mean((x - mean) ** 2, axis=(0, 2, 3), keepdims=True)
            x = (x - mean) * jax.lax.rsqrt(var + BN_EPS)
            x = x * gamma[None, :, None, None] + beta[None, :, None, None]
            x = jnp.where(x >= 0, x, LEAKY_SLOPE * x)
            # mirror the kernel pipeline's bf16 inter-layer activations
            x = x.astype(jnp.bfloat16).astype(jnp.float32)
        else:
            x = jnp.tanh(x)
    return x


# --------------------------------- main -------------------------------------
if __name__ == "__main__":
    # Synthetic VQVAEConfig
    cfg = {
        "latent_dim": 4,
        "transpose_bn_blocks": 3,
        "transposebn_channels": [4, 8, 8, 3],
        "transpose_kernel_size": [4, 4, 3],
        "transpose_kernel_strides": [2, 2, 1],
    }

    key = jax.random.PRNGKey(0)
    params = []
    for i in range(cfg["transpose_bn_blocks"]):
        cin = cfg["transposebn_channels"][i]
        cout = cfg["transposebn_channels"][i + 1]
        k = cfg["transpose_kernel_size"][i]
        key, k1, k2, k3, k4 = jax.random.split(key, 5)
        bound = 1.0 / float(cin * k * k) ** 0.5
        W = jax.random.uniform(k1, (cin, cout, k, k), jnp.float32, -bound, bound)
        b = jax.random.uniform(k2, (cout,), jnp.float32, -bound, bound)
        gamma = 1.0 + 0.1 * jax.random.normal(k3, (cout,), jnp.float32)
        beta = 0.1 * jax.random.normal(k4, (cout,), jnp.float32)
        params.append((W, b, gamma, beta))

    key, kx = jax.random.split(key)
    x = jax.random.normal(kx, (2, cfg["latent_dim"], 4, 4), jnp.float32)

    fwd = jax.jit(lambda xx, pp: decoder_forward(xx, pp, cfg))
    out = jax.block_until_ready(fwd(x, params))
    ref = jax.block_until_ready(decoder_ref(x, params, cfg))

    assert out.shape == (2, 3, 24, 24), out.shape
    err = float(jnp.max(jnp.abs(out - ref)))
    assert jnp.allclose(out, ref, atol=1e-2, rtol=1e-2), err
    print("KERNEL_OK")
</pallas_src>

<mosaic_0001>
module attributes {stable_mosaic.version = 11 : i64} {
  func.func @_gemm_bias_stats_kernel(%arg0: i32, %arg1: memref<16x128xbf16, #tpu.memory_space<vmem>>, %arg2: memref<32x16xbf16, #tpu.memory_space<vmem>>, %arg3: memref<32x1xf32, #tpu.memory_space<vmem>>, %arg4: memref<32x128xf32, #tpu.memory_space<vmem>>, %arg5: memref<1x32x2xf32, #tpu.memory_space<vmem>>) attributes {dimension_semantics = [#tpu.dimension_semantics<parallel>], iteration_bounds = array<i64: 1>, scalar_prefetch = 0 : i64, scratch_operands = 0 : i64, tpu.core_type = #tpu.core_type<tc>, window_params = [{transform_indices = @transform_0, window_bounds = array<i64: 16, 128>}, {pipeline_mode = #tpu.pipeline_mode<synchronous>, transform_indices = @transform_1, window_bounds = array<i64: 32, 16>}, {pipeline_mode = #tpu.pipeline_mode<synchronous>, transform_indices = @transform_2, window_bounds = array<i64: 32, 1>}, {transform_indices = @transform_3, window_bounds = array<i64: 32, 128>}, {transform_indices = @transform_4, window_bounds = array<i64: 1, 32, 2>}]} {
    %c0 = arith.constant 0 : index
    %c0_0 = arith.constant 0 : index
    %0 = vector.load %arg2[%c0, %c0_0] : memref<32x16xbf16, #tpu.memory_space<vmem>>, vector<32x16xbf16>
    %c0_1 = arith.constant 0 : index
    %c0_2 = arith.constant 0 : index
    %1 = vector.load %arg1[%c0_1, %c0_2] : memref<16x128xbf16, #tpu.memory_space<vmem>>, vector<16x128xbf16>
    %cst = arith.constant dense<0.000000e+00> : vector<32x128xf32>
    %2 = tpu.matmul %0, %1, %cst {dimension_numbers = #tpu.dot_dimension_numbers<[1], [0], [0], [1], [0, 0, 1, 1], [], []>} : vector<32x16xbf16>, vector<16x128xbf16>, vector<32x128xf32> -> vector<32x128xf32>
    %c0_3 = arith.constant 0 : index
    %c0_4 = arith.constant 0 : index
    %3 = vector.load %arg3[%c0_3, %c0_4] : memref<32x1xf32, #tpu.memory_space<vmem>>, vector<32x1xf32>
    %4 = vector.broadcast %3 : vector<32x1xf32> to vector<32x128xf32>
    %5 = arith.addf %2, %4 : vector<32x128xf32>
    %c0_5 = arith.constant 0 : index
    %c0_6 = arith.constant 0 : index
    %6 = vector.load %arg4[%c0_5, %c0_6] : memref<32x128xf32, #tpu.memory_space<vmem>>, vector<32x128xf32>
    tpu.vector_store %arg4[%c0_5, %c0_6], %5 {strides = array<i32>} : memref<32x128xf32, #tpu.memory_space<vmem>>, vector<32x128xf32>,
    %c128_i32 = arith.constant 128 : i32
    %7 = arith.muli %arg0, %c128_i32 : i32
    %8 = tpu.iota {dimensions = array<i32: 1>} : vector<32x128xi32>
    %9 = vector.broadcast %7 : i32 to vector<32x128xi32>
    %10 = arith.addi %9, %8 : vector<32x128xi32>
    %c50_i32 = arith.constant 50 : i32
    %11 = vector.broadcast %c50_i32 : i32 to vector<32x128xi32>
    %12 = arith.cmpi slt, %10, %11 : vector<32x128xi32>
    %cst_7 = arith.constant 0.000000e+00 : f32
    %13 = vector.broadcast %cst_7 : f32 to vector<32x128xf32>
    %14 = arith.select %12, %5, %13 : vector<32x128xi1>, vector<32x128xf32>
    %cst_8 = arith.constant dense<0.000000e+00> : vector<32xf32>
    %15 = vector.multi_reduction <add>, %14, %cst_8 [1] : vector<32x128xf32> to vector<32xf32>
    %16 = vector.shape_cast %15 : vector<32xf32> to vector<32x1xf32>
    %17 = arith.mulf %14, %14 : vector<32x128xf32>
    %cst_9 = arith.constant dense<0.000000e+00> : vector<32xf32>
    %18 = vector.multi_reduction <add>, %17, %cst_9 [1] : vector<32x128xf32> to vector<32xf32>
    %19 = vector.shape_cast %18 : vector<32xf32> to vector<32x1xf32>
    %20 = tpu.concatenate %16, %19 in 1 : vector<32x1xf32>, vector<32x1xf32> -> vector<32x2xf32>
    %21 = vector.shape_cast %20 : vector<32x2xf32> to vector<1x32x2xf32>
    %c0_10 = arith.constant 0 : index
    %c0_11 = arith.constant 0 : index
    %c0_12 = arith.constant 0 : index
    %22 = vector.load %arg5[%c0_10, %c0_11, %c0_12] : memref<1x32x2xf32, #tpu.memory_space<vmem>>, vector<1x32x2xf32>
    tpu.vector_store %arg5[%c0_10, %c0_11, %c0_12], %21 {strides = array<i32>} : memref<1x32x2xf32, #tpu.memory_space<vmem>>, vector<1x32x2xf32>,
    return
  }
  func.func @transform_0(%arg0: i32) -> (i32, i32) {
    %c0_i32 = arith.constant 0 : i32
    %c0_i32_0 = arith.constant 0 : i32
    return %c0_i32, %arg0 : i32, i32
  }
  func.func @transform_1(%arg0: i32) -> (i32, i32) {
    %c0_i32 = arith.constant 0 : i32
    %c0_i32_0 = arith.constant 0 : i32
    %c0_i32_1 = arith.constant 0 : i32
    return %c0_i32, %c0_i32_0 : i32, i32
  }
  func.func @transform_2(%arg0: i32) -> (i32, i32) {
    %c0_i32 = arith.constant 0 : i32
    %c0_i32_0 = arith.constant 0 : i32
    %c0_i32_1 = arith.constant 0 : i32
    return %c0_i32, %c0_i32_0 : i32, i32
  }
  func.func @transform_3(%arg0: i32) -> (i32, i32) {
    %c0_i32 = arith.constant 0 : i32
    %c0_i32_0 = arith.constant 0 : i32
    return %c0_i32, %arg0 : i32, i32
  }
  func.func @transform_4(%arg0: i32) -> (i32, i32, i32) {
    %c0_i32 = arith.constant 0 : i32
    %c0_i32_0 = arith.constant 0 : i32
    %c0_i32_1 = arith.constant 0 : i32
    return %arg0, %c0_i32, %c0_i32_0 : i32, i32, i32
  }
}

module attributes {stable_mosaic.version = 11 : i64} {
  func.func @_bn_lrelu_kernel(%arg0: i32, %arg1: memref<32x128xf32, #tpu.memory_space<vmem>>, %arg2: memref<32x1xf32, #tpu.memory_space<vmem>>, %arg3: memref<32x1xf32, #tpu.memory_space<vmem>>, %arg4: memref<32x128xbf16, #tpu.memory_space<vmem>>) attributes {dimension_semantics = [#tpu.dimension_semantics<parallel>], iteration_bounds = array<i64: 1>, scalar_prefetch = 0 : i64, scratch_operands = 0 : i64, tpu.core_type = #tpu.core_type<tc>, window_params = [{transform_indices = @transform_0, window_bounds = array<i64: 32, 128>}, {pipeline_mode = #tpu.pipeline_mode<synchronous>, transform_indices = @transform_1, window_bounds = array<i64: 32, 1>}, {pipeline_mode = #tpu.pipeline_mode<synchronous>, transform_indices = @transform_2, window_bounds = array<i64: 32, 1>}, {transform_indices = @transform_3, window_bounds = array<i64: 32, 128>}]} {
    %c0 = arith.constant 0 : index
    %c0_0 = arith.constant 0 : index
    %0 = vector.load %arg1[%c0, %c0_0] : memref<32x128xf32, #tpu.memory_space<vmem>>, vector<32x128xf32>
    %c0_1 = arith.constant 0 : index
    %c0_2 = arith.constant 0 : index
    %1 = vector.load %arg2[%c0_1, %c0_2] : memref<32x1xf32, #tpu.memory_space<vmem>>, vector<32x1xf32>
    %2 = vector.broadcast %1 : vector<32x1xf32> to vector<32x128xf32>
    %3 = arith.mulf %0, %2 : vector<32x128xf32>
    %c0_3 = arith.constant 0 : index
    %c0_4 = arith.constant 0 : index
    %4 = vector.load %arg3[%c0_3, %c0_4] : memref<32x1xf32, #tpu.memory_space<vmem>>, vector<32x1xf32>
    %5 = vector.broadcast %4 : vector<32x1xf32> to vector<32x128xf32>
    %6 = arith.addf %3, %5 : vector<32x128xf32>
    %cst = arith.constant 0.000000e+00 : f32
    %7 = vector.broadcast %cst : f32 to vector<32x128xf32>
    %8 = arith.cmpf oge, %6, %7 : vector<32x128xf32>
    %cst_5 = arith.constant 2.000000e-01 : f32
    %9 = vector.broadcast %cst_5 : f32 to vector<32x128xf32>
    %10 = arith.mulf %9, %6 : vector<32x128xf32>
    %11 = arith.select %8, %6, %10 : vector<32x128xi1>, vector<32x128xf32>
    %12 = arith.truncf %11 : vector<32x128xf32> to vector<32x128xbf16>
    %c0_6 = arith.constant 0 : index
    %c0_7 = arith.constant 0 : index
    %13 = vector.load %arg4[%c0_6, %c0_7] : memref<32x128xbf16, #tpu.memory_space<vmem>>, vector<32x128xbf16>
    tpu.vector_store %arg4[%c0_6, %c0_7], %12 {strides = array<i32>} : memref<32x128xbf16, #tpu.memory_space<vmem>>, vector<32x128xbf16>,
    return
  }
  func.func @transform_0(%arg0: i32) -> (i32, i32) {
    %c0_i32 = arith.constant 0 : i32
    %c0_i32_0 = arith.constant 0 : i32
    return %c0_i32, %arg0 : i32, i32
  }
  func.func @transform_1(%arg0: i32) -> (i32, i32) {
    %c0_i32 = arith.constant 0 : i32
    %c0_i32_0 = arith.constant 0 : i32
    %c0_i32_1 = arith.constant 0 : i32
    return %c0_i32, %c0_i32_0 : i32, i32
  }
  func.func @transform_2(%arg0: i32) -> (i32, i32) {
    %c0_i32 = arith.constant 0 : i32
    %c0_i32_0 = arith.constant 0 : i32
    %c0_i32_1 = arith.constant 0 : i32
    return %c0_i32, %c0_i32_0 : i32, i32
  }
  func.func @transform_3(%arg0: i32) -> (i32, i32) {
    %c0_i32 = arith.constant 0 : i32
    %c0_i32_0 = arith.constant 0 : i32
    return %c0_i32, %arg0 : i32, i32
  }
}

module attributes {stable_mosaic.version = 11 : i64} {
  func.func @_gemm_bias_stats_kernel(%arg0: i32, %arg1: memref<32x256xbf16, #tpu.memory_space<vmem>>, %arg2: memref<32x32xbf16, #tpu.memory_space<vmem>>, %arg3: memref<32x1xf32, #tpu.memory_space<vmem>>, %arg4: memref<32x256xf32, #tpu.memory_space<vmem>>, %arg5: memref<1x32x2xf32, #tpu.memory_space<vmem>>) attributes {dimension_semantics = [#tpu.dimension_semantics<parallel>], iteration_bounds = array<i64: 1>, scalar_prefetch = 0 : i64, scratch_operands = 0 : i64, tpu.core_type = #tpu.core_type<tc>, window_params = [{transform_indices = @transform_0, window_bounds = array<i64: 32, 256>}, {pipeline_mode = #tpu.pipeline_mode<synchronous>, transform_indices = @transform_1, window_bounds = array<i64: 32, 32>}, {pipeline_mode = #tpu.pipeline_mode<synchronous>, transform_indices = @transform_2, window_bounds = array<i64: 32, 1>}, {transform_indices = @transform_3, window_bounds = array<i64: 32, 256>}, {transform_indices = @transform_4, window_bounds = array<i64: 1, 32, 2>}]} {
    %c0 = arith.constant 0 : index
    %c0_0 = arith.constant 0 : index
    %0 = vector.load %arg2[%c0, %c0_0] : memref<32x32xbf16, #tpu.memory_space<vmem>>, vector<32x32xbf16>
    %c0_1 = arith.constant 0 : index
    %c0_2 = arith.constant 0 : index
    %1 = vector.load %arg1[%c0_1, %c0_2] : memref<32x256xbf16, #tpu.memory_space<vmem>>, vector<32x256xbf16>
    %cst = arith.constant dense<0.000000e+00> : vector<32x256xf32>
    %2 = tpu.matmul %0, %1, %cst {dimension_numbers = #tpu.dot_dimension_numbers<[1], [0], [0], [1], [0, 0, 1, 1], [], []>} : vector<32x32xbf16>, vector<32x256xbf16>, vector<32x256xf32> -> vector<32x256xf32>
    %c0_3 = arith.constant 0 : index
    %c0_4 = arith.constant 0 : index
    %3 = vector.load %arg3[%c0_3, %c0_4] : memref<32x1xf32, #tpu.memory_space<vmem>>, vector<32x1xf32>
    %4 = vector.broadcast %3 : vector<32x1xf32> to vector<32x256xf32>
    %5 = arith.addf %2, %4 : vector<32x256xf32>
    %c0_5 = arith.constant 0 : index
    %c0_6 = arith.constant 0 : index
    %6 = vector.load %arg4[%c0_5, %c0_6] : memref<32x256xf32, #tpu.memory_space<vmem>>, vector<32x256xf32>
    tpu.vector_store %arg4[%c0_5, %c0_6], %5 {strides = array<i32>} : memref<32x256xf32, #tpu.memory_space<vmem>>, vector<32x256xf32>,
    %c256_i32 = arith.constant 256 : i32
    %7 = arith.muli %arg0, %c256_i32 : i32
    %8 = tpu.iota {dimensions = array<i32: 1>} : vector<32x256xi32>
    %9 = vector.broadcast %7 : i32 to vector<32x256xi32>
    %10 = arith.addi %9, %8 : vector<32x256xi32>
    %c242_i32 = arith.constant 242 : i32
    %11 = vector.broadcast %c242_i32 : i32 to vector<32x256xi32>
    %12 = arith.cmpi slt, %10, %11 : vector<32x256xi32>
    %cst_7 = arith.constant 0.000000e+00 : f32
    %13 = vector.broadcast %cst_7 : f32 to vector<32x256xf32>
    %14 = arith.select %12, %5, %13 : vector<32x256xi1>, vector<32x256xf32>
    %cst_8 = arith.constant dense<0.000000e+00> : vector<32xf32>
    %15 = vector.multi_reduction <add>, %14, %cst_8 [1] : vector<32x256xf32> to vector<32xf32>
    %16 = vector.shape_cast %15 : vector<32xf32> to vector<32x1xf32>
    %17 = arith.mulf %14, %14 : vector<32x256xf32>
    %cst_9 = arith.constant dense<0.000000e+00> : vector<32xf32>
    %18 = vector.multi_reduction <add>, %17, %cst_9 [1] : vector<32x256xf32> to vector<32xf32>
    %19 = vector.shape_cast %18 : vector<32xf32> to vector<32x1xf32>
    %20 = tpu.concatenate %16, %19 in 1 : vector<32x1xf32>, vector<32x1xf32> -> vector<32x2xf32>
    %21 = vector.shape_cast %20 : vector<32x2xf32> to vector<1x32x2xf32>
    %c0_10 = arith.constant 0 : index
    %c0_11 = arith.constant 0 : index
    %c0_12 = arith.constant 0 : index
    %22 = vector.load %arg5[%c0_10, %c0_11, %c0_12] : memref<1x32x2xf32, #tpu.memory_space<vmem>>, vector<1x32x2xf32>
    tpu.vector_store %arg5[%c0_10, %c0_11, %c0_12], %21 {strides = array<i32>} : memref<1x32x2xf32, #tpu.memory_space<vmem>>, vector<1x32x2xf32>,
    return
  }
  func.func @transform_0(%arg0: i32) -> (i32, i32) {
    %c0_i32 = arith.constant 0 : i32
    %c0_i32_0 = arith.constant 0 : i32
    return %c0_i32, %arg0 : i32, i32
  }
  func.func @transform_1(%arg0: i32) -> (i32, i32) {
    %c0_i32 = arith.constant 0 : i32
    %c0_i32_0 = arith.constant 0 : i32
    %c0_i32_1 = arith.constant 0 : i32
    return %c0_i32, %c0_i32_0 : i32, i32
  }
  func.func @transform_2(%arg0: i32) -> (i32, i32) {
    %c0_i32 = arith.constant 0 : i32
    %c0_i32_0 = arith.constant 0 : i32
    %c0_i32_1 = arith.constant 0 : i32
    return %c0_i32, %c0_i32_0 : i32, i32
  }
  func.func @transform_3(%arg0: i32) -> (i32, i32) {
    %c0_i32 = arith.constant 0 : i32
    %c0_i32_0 = arith.constant 0 : i32
    return %c0_i32, %arg0 : i32, i32
  }
  func.func @transform_4(%arg0: i32) -> (i32, i32, i32) {
    %c0_i32 = arith.constant 0 : i32
    %c0_i32_0 = arith.constant 0 : i32
    %c0_i32_1 = arith.constant 0 : i32
    return %arg0, %c0_i32, %c0_i32_0 : i32, i32, i32
  }
}

module attributes {stable_mosaic.version = 11 : i64} {
  func.func @_bn_lrelu_kernel(%arg0: i32, %arg1: memref<32x256xf32, #tpu.memory_space<vmem>>, %arg2: memref<32x1xf32, #tpu.memory_space<vmem>>, %arg3: memref<32x1xf32, #tpu.memory_space<vmem>>, %arg4: memref<32x256xbf16, #tpu.memory_space<vmem>>) attributes {dimension_semantics = [#tpu.dimension_semantics<parallel>], iteration_bounds = array<i64: 1>, scalar_prefetch = 0 : i64, scratch_operands = 0 : i64, tpu.core_type = #tpu.core_type<tc>, window_params = [{transform_indices = @transform_0, window_bounds = array<i64: 32, 256>}, {pipeline_mode = #tpu.pipeline_mode<synchronous>, transform_indices = @transform_1, window_bounds = array<i64: 32, 1>}, {pipeline_mode = #tpu.pipeline_mode<synchronous>, transform_indices = @transform_2, window_bounds = array<i64: 32, 1>}, {transform_indices = @transform_3, window_bounds = array<i64: 32, 256>}]} {
    %c0 = arith.constant 0 : index
    %c0_0 = arith.constant 0 : index
    %0 = vector.load %arg1[%c0, %c0_0] : memref<32x256xf32, #tpu.memory_space<vmem>>, vector<32x256xf32>
    %c0_1 = arith.constant 0 : index
    %c0_2 = arith.constant 0 : index
    %1 = vector.load %arg2[%c0_1, %c0_2] : memref<32x1xf32, #tpu.memory_space<vmem>>, vector<32x1xf32>
    %2 = vector.broadcast %1 : vector<32x1xf32> to vector<32x256xf32>
    %3 = arith.mulf %0, %2 : vector<32x256xf32>
    %c0_3 = arith.constant 0 : index
    %c0_4 = arith.constant 0 : index
    %4 = vector.load %arg3[%c0_3, %c0_4] : memref<32x1xf32, #tpu.memory_space<vmem>>, vector<32x1xf32>
    %5 = vector.broadcast %4 : vector<32x1xf32> to vector<32x256xf32>
    %6 = arith.addf %3, %5 : vector<32x256xf32>
    %cst = arith.constant 0.000000e+00 : f32
    %7 = vector.broadcast %cst : f32 to vector<32x256xf32>
    %8 = arith.cmpf oge, %6, %7 : vector<32x256xf32>
    %cst_5 = arith.constant 2.000000e-01 : f32
    %9 = vector.broadcast %cst_5 : f32 to vector<32x256xf32>
    %10 = arith.mulf %9, %6 : vector<32x256xf32>
    %11 = arith.select %8, %6, %10 : vector<32x256xi1>, vector<32x256xf32>
    %12 = arith.truncf %11 : vector<32x256xf32> to vector<32x256xbf16>
    %c0_6 = arith.constant 0 : index
    %c0_7 = arith.constant 0 : index
    %13 = vector.load %arg4[%c0_6, %c0_7] : memref<32x256xbf16, #tpu.memory_space<vmem>>, vector<32x256xbf16>
    tpu.vector_store %arg4[%c0_6, %c0_7], %12 {strides = array<i32>} : memref<32x256xbf16, #tpu.memory_space<vmem>>, vector<32x256xbf16>,
    return
  }
  func.func @transform_0(%arg0: i32) -> (i32, i32) {
    %c0_i32 = arith.constant 0 : i32
    %c0_i32_0 = arith.constant 0 : i32
    return %c0_i32, %arg0 : i32, i32
  }
  func.func @transform_1(%arg0: i32) -> (i32, i32) {
    %c0_i32 = arith.constant 0 : i32
    %c0_i32_0 = arith.constant 0 : i32
    %c0_i32_1 = arith.constant 0 : i32
    return %c0_i32, %c0_i32_0 : i32, i32
  }
  func.func @transform_2(%arg0: i32) -> (i32, i32) {
    %c0_i32 = arith.constant 0 : i32
    %c0_i32_0 = arith.constant 0 : i32
    %c0_i32_1 = arith.constant 0 : i32
    return %c0_i32, %c0_i32_0 : i32, i32
  }
  func.func @transform_3(%arg0: i32) -> (i32, i32) {
    %c0_i32 = arith.constant 0 : i32
    %c0_i32_0 = arith.constant 0 : i32
    return %c0_i32, %arg0 : i32, i32
  }
}

module attributes {stable_mosaic.version = 11 : i64} {
  func.func @_gemm_bias_tanh_kernel(%arg0: i32, %arg1: memref<72x384xbf16, #tpu.memory_space<vmem>>, %arg2: memref<3x72xbf16, #tpu.memory_space<vmem>>, %arg3: memref<3x1xf32, #tpu.memory_space<vmem>>, %arg4: memref<3x384xf32, #tpu.memory_space<vmem>>) attributes {dimension_semantics = [#tpu.dimension_semantics<parallel>], iteration_bounds = array<i64: 3>, scalar_prefetch = 0 : i64, scratch_operands = 0 : i64, tpu.core_type = #tpu.core_type<tc>, window_params = [{transform_indices = @transform_0, window_bounds = array<i64: 72, 384>}, {pipeline_mode = #tpu.pipeline_mode<synchronous>, transform_indices = @transform_1, window_bounds = array<i64: 3, 72>}, {pipeline_mode = #tpu.pipeline_mode<synchronous>, transform_indices = @transform_2, window_bounds = array<i64: 3, 1>}, {transform_indices = @transform_3, window_bounds = array<i64: 3, 384>}]} {
    %c0 = arith.constant 0 : index
    %c0_0 = arith.constant 0 : index
    %0 = vector.load %arg2[%c0, %c0_0] : memref<3x72xbf16, #tpu.memory_space<vmem>>, vector<3x72xbf16>
    %c0_1 = arith.constant 0 : index
    %c0_2 = arith.constant 0 : index
    %1 = vector.load %arg1[%c0_1, %c0_2] : memref<72x384xbf16, #tpu.memory_space<vmem>>, vector<72x384xbf16>
    %cst = arith.constant dense<0.000000e+00> : vector<3x384xf32>
    %2 = tpu.matmul %0, %1, %cst {dimension_numbers = #tpu.dot_dimension_numbers<[1], [0], [0], [1], [0, 0, 1, 1], [], []>} : vector<3x72xbf16>, vector<72x384xbf16>, vector<3x384xf32> -> vector<3x384xf32>
    %c0_3 = arith.constant 0 : index
    %c0_4 = arith.constant 0 : index
    %3 = vector.load %arg3[%c0_3, %c0_4] : memref<3x1xf32, #tpu.memory_space<vmem>>, vector<3x1xf32>
    %4 = vector.broadcast %3 : vector<3x1xf32> to vector<3x384xf32>
    %5 = arith.addf %2, %4 : vector<3x384xf32>
    %6 = math.tanh %5 : vector<3x384xf32>
    %c0_5 = arith.constant 0 : index
    %c0_6 = arith.constant 0 : index
    %7 = vector.load %arg4[%c0_5, %c0_6] : memref<3x384xf32, #tpu.memory_space<vmem>>, vector<3x384xf32>
    tpu.vector_store %arg4[%c0_5, %c0_6], %6 {strides = array<i32>} : memref<3x384xf32, #tpu.memory_space<vmem>>, vector<3x384xf32>,
    return
  }
  func.func @transform_0(%arg0: i32) -> (i32, i32) {
    %c0_i32 = arith.constant 0 : i32
    %c0_i32_0 = arith.constant 0 : i32
    return %c0_i32, %arg0 : i32, i32
  }
  func.func @transform_1(%arg0: i32) -> (i32, i32) {
    %c0_i32 = arith.constant 0 : i32
    %c0_i32_0 = arith.constant 0 : i32
    %c0_i32_1 = arith.constant 0 : i32
    return %c0_i32, %c0_i32_0 : i32, i32
  }
  func.func @transform_2(%arg0: i32) -> (i32, i32) {
    %c0_i32 = arith.constant 0 : i32
    %c0_i32_0 = arith.constant 0 : i32
    %c0_i32_1 = arith.constant 0 : i32
    return %c0_i32, %c0_i32_0 : i32, i32
  }
  func.func @transform_3(%arg0: i32) -> (i32, i32) {
    %c0_i32 = arith.constant 0 : i32
    %c0_i32_0 = arith.constant 0 : i32
    return %c0_i32, %arg0 : i32, i32
  }
}

</mosaic_0001>

<llo_original>
// kernel: tile.34
$region0: #{tile.34}
  #allocation0 [shape = 's32[1]{0}', space=sflag, size = 0x4, scoped, tag = 'scoped memory for tile.34']
  %s0 = inlined_call_operand.vmem [shape: f32[8], index: 0, kind: input, shape index: {}]
  %s1 = inlined_call_operand.vmem [shape: f32[4,8], index: 1, kind: output, shape index: {}]
  // Predicated region
  $region2: #{tile.34} parent=0 // pred_check
    _
  $region3: #{tile.34} parent=0 // pred_check_branch
    %3 = sbr.rel (0) target = $region5
  $region4: #{tile.34} parent=0 // pred_region
    _
  $region5: #{tile.34} parent=0 // pred_fallthru
    _
  %v4 = vld [vmem:[%s0] ss:$0 sm:$0xff]
  %5 = vst [vmem:[%s1] sm:$0xf] %v4

// kernel: reverse
$region0: #{reverse}
  %s0 = inlined_call_operand.vmem [shape: f32[8,3,3,3], index: 0, kind: input, shape index: {}]
  %s1 = inlined_call_operand.vmem [shape: bf16[8,3,3,3], index: 1, kind: output, shape index: {}]
  $region1: #{reverse} parent=0
    #allocation0 [shape = 'u8[73728]{0}', space=vmem, size = 0x12000, scoped, tag = 'operand span for operand 0']
    #allocation1 [shape = 'u8[36864]{0}', space=vmem, size = 0x9000, scoped, tag = 'packed  for operand 0']
    #allocation2 [shape = 'u8[36864]{0}', space=vmem, size = 0x9000, scoped, tag = 'operand span for operand 1']
    #allocation3 [shape = 'u8[9216]{0}', space=vmem, size = 0x2400, scoped, tag = 'packed  for operand 1']
    %s2 = scalar_lea.vmem [#allocation1], 4
    // Predicated region
    $region2: #{reverse} parent=1 // pred_check
      _
    $region3: #{reverse} parent=1 // pred_check_branch
      %4 = sbr.rel (0) target = $region5
    $region4: #{reverse} parent=1 // pred_region
      // Predicated region
      $region6: #{reverse} parent=4 // pred_check
        _
      $region7: #{reverse} parent=4 // pred_check_branch
        %6 = sbr.rel target = $region9
      $region8: #{reverse} parent=4 // pred_region
        // Predicated region
        $region21: #{reverse} parent=8 // pred_check
          _
        $region22: #{reverse} parent=8 // pred_check_branch
          %37 = sbr.rel (0) target = $region24
        $region23: #{reverse} parent=8 // pred_region
          loop: start=0, step=1, limit=1
          $region25: #{reverse} parent=23 // loop_pre_header
            _
          $region26: #{reverse} parent=23 // loop_header
            %s39 = sphi 0, %s43
            %p40 = scmp.ge.s32.totalorder %s39, 1
            %s44 = sphi %s0, %s0
            %s45 = sphi %s2, %s2
          $region27: #{reverse} parent=23 // loop_header_branch
            %42 = sbr.rel (%p40) target = $region31
          $region28: #{reverse} parent=23 // loop_body
            _
          $region29: #{reverse} parent=23 // loop_footer
            %s43 = sadd.s32 1, %s39
          $region30: #{reverse} parent=23 // loop_footer_branch
            %38 = sbr.rel target = $region26
          $region31: #{reverse} parent=23 // loop_exit
            _
          loop: start=0, step=1, limit=1
          $region32: #{reverse} parent=23 // loop_pre_header
            _
          $region33: #{reverse} parent=23 // loop_header
            %s48 = sphi 0, %s52
            %p49 = scmp.ge.s32.totalorder %s48, 1
            %s53 = sphi %s0, %s0
            %s54 = sphi %s2, %s2
          $region34: #{reverse} parent=23 // loop_header_branch
            %51 = sbr.rel (%p49) target = $region38
          $region35: #{reverse} parent=23 // loop_body
            %v55 = vld [vmem:[%s53] sm:$0xf]
            %56 = vst [vmem:[%s54] sm:$0xf] %v55
            %v57 = vld [vmem:[%s53 + $0x4] sm:$0xf]
            %58 = vst [vmem:[%s54 + $0x8] sm:$0xf] %v57
            %v59 = vld [vmem:[%s53 + $0x8] sm:$0xf]
            %60 = vst [vmem:[%s54 + $0x10] sm:$0xf] %v59
            %v61 = vld [vmem:[%s53 + $0xc] sm:$0xf]
            %62 = vst [vmem:[%s54 + $0x18] sm:$0xf] %v61
            %v63 = vld [vmem:[%s53 + $0x10] sm:$0xf]
            %64 = vst [vmem:[%s54 + $0x20] sm:$0xf] %v63
            %v65 = vld [vmem:[%s53 + $0x14] sm:$0xf]
            %66 = vst [vmem:[%s54 + $0x28] sm:$0xf] %v65
            %v67 = vld [vmem:[%s53 + $0x18] sm:$0xf]
            %68 = vst [vmem:[%s54 + $0x30] sm:$0xf] %v67
            %v69 = vld [vmem:[%s53 + $0x1c] sm:$0xf]
            %70 = vst [vmem:[%s54 + $0x38] sm:$0xf] %v69
            %v71 = vld [vmem:[%s53 + $0x20] sm:$0xf]
            %72 = vst [vmem:[%s54 + $0x40] sm:$0xf] %v71
          $region36: #{reverse} parent=23 // loop_footer
            %s52 = sadd.s32 1, %s48
          $region37: #{reverse} parent=23 // loop_footer_branch
            %47 = sbr.rel target = $region33
          $region38: #{reverse} parent=23 // loop_exit
            _
        $region24: #{reverse} parent=8 // pred_fallthru
          _
      $region9: #{reverse} parent=4 // pred_fallthru
        _
      // Predicated region
      $region10: #{reverse} parent=4 // pred_check
        _
      $region11: #{reverse} parent=4 // pred_check_branch
        %8 = sbr.rel (0) target = $region13
      $region12: #{reverse} parent=4 // pred_region
        loop: start=0, step=1, limit=1
        $region14: #{reverse} parent=12 // loop_pre_header
          _
        $region15: #{reverse} parent=12 // loop_header
          %s11 = sphi 0, %s15
          %p12 = scmp.ge.s32.totalorder %s11, 1
          %s16 = sphi %s0, %s0
          %s17 = sphi %s2, %s2
        $region16: #{reverse} parent=12 // loop_header_branch
          %14 = sbr.rel (%p12) target = $region20
        $region17: #{reverse} parent=12 // loop_body
          %v18 = vld [vmem:[%s16] sm:$0xf]
          %19 = vst [vmem:[%s17] sm:$0xf] %v18
          %v20 = vld [vmem:[%s16 + $0x4] sm:$0xf]
          %21 = vst [vmem:[%s17 + $0x8] sm:$0xf] %v20
          %v22 = vld [vmem:[%s16 + $0x8] sm:$0xf]
          %23 = vst [vmem:[%s17 + $0x10] sm:$0xf] %v22
          %v24 = vld [vmem:[%s16 + $0xc] sm:$0xf]
          %25 = vst [vmem:[%s17 + $0x18] sm:$0xf] %v24
          %v26 = vld [vmem:[%s16 + $0x10] sm:$0xf]
          %27 = vst [vmem:[%s17 + $0x20] sm:$0xf] %v26
          %v28 = vld [vmem:[%s16 + $0x14] sm:$0xf]
          %29 = vst [vmem:[%s17 + $0x28] sm:$0xf] %v28
          %v30 = vld [vmem:[%s16 + $0x18] sm:$0xf]
          %31 = vst [vmem:[%s17 + $0x30] sm:$0xf] %v30
          %v32 = vld [vmem:[%s16 + $0x1c] sm:$0xf]
          %33 = vst [vmem:[%s17 + $0x38] sm:$0xf] %v32
          %v34 = vld [vmem:[%s16 + $0x20] sm:$0xf]
          %35 = vst [vmem:[%s17 + $0x40] sm:$0xf] %v34
        $region18: #{reverse} parent=12 // loop_footer
          %s15 = sadd.s32 1, %s11
        $region19: #{reverse} parent=12 // loop_footer_branch
          %10 = sbr.rel target = $region15
        $region20: #{reverse} parent=12 // loop_exit
          _
      $region13: #{reverse} parent=4 // pred_fallthru
        _
    $region5: #{reverse} parent=1 // pred_fallthru
      _
    %73 = vnop
    %s75 = sshllo.u32 0, 4
    %s76 = smul.addr 4, 17
    %s77 = scalar_lea.vmem [#allocation1], %s76
    %v78 = vld [vmem:[%s77] sm:%s75]
    %s79 = scalar_lea.vmem [#allocation0], 136
    %80 = vst [vmem:[%s79] sm:%s75] %v78
    %s81 = smul.addr 4, 16
    %s82 = scalar_lea.vmem [#allocation1], %s81
    %v83 = vld [vmem:[%s82] sm:%s75]
    %s84 = scalar_lea.vmem [#allocation0], 128
    %85 = vst [vmem:[%s84] sm:%s75] %v83
    %s86 = smul.addr 4, 15
    %s87 = scalar_lea.vmem [#allocation1], %s86
    %v88 = vld [vmem:[%s87] sm:%s75]
    %s89 = scalar_lea.vmem [#allocation0], 120
    %90 = vst [vmem:[%s89] sm:%s75] %v88
    %s91 = smul.addr 4, 14
    %s92 = scalar_lea.vmem [#allocation1], %s91
    %v93 = vld [vmem:[%s92] sm:%s75]
    %s94 = scalar_lea.vmem [#allocation0], 112
    %95 = vst [vmem:[%s94] sm:%s75] %v93
    %s96 = smul.addr 4, 13
    %s97 = scalar_lea.vmem [#allocation1], %s96
    %v98 = vld [vmem:[%s97] sm:%s75]
    %s99 = scalar_lea.vmem [#allocation0], 104
    %100 = vst [vmem:[%s99] sm:%s75] %v98
    %s101 = smul.addr 4, 12
    %s102 = scalar_lea.vmem [#allocation1], %s101
    %v103 = vld [vmem:[%s102] sm:%s75]
    %s104 = scalar_lea.vmem [#allocation0], 96
    %105 = vst [vmem:[%s104] sm:%s75] %v103
    %s106 = smul.addr 4, 11
    %s107 = scalar_lea.vmem [#allocation1], %s106
    %v108 = vld [vmem:[%s107] sm:%s75]
    %s109 = scalar_lea.vmem [#allocation0], 88
    %110 = vst [vmem:[%s109] sm:%s75] %v108
    %s111 = smul.addr 4, 10
    %s112 = scalar_lea.vmem [#allocation1], %s111
    %v113 = vld [vmem:[%s112] sm:%s75]
    %s114 = scalar_lea.vmem [#allocation0], 80
    %115 = vst [vmem:[%s114] sm:%s75] %v113
    %s116 = smul.addr 4, 9
    %s117 = scalar_lea.vmem [#allocation1], %s116
    %v118 = vld [vmem:[%s117] sm:%s75]
    %s119 = scalar_lea.vmem [#allocation0], 72
    %120 = vst [vmem:[%s119] sm:%s75] %v118
    %s121 = smul.addr 4, 8
    %s122 = scalar_lea.vmem [#allocation1], %s121
    %v123 = vld [vmem:[%s122] sm:%s75]
    %s124 = scalar_lea.vmem [#allocation0], 64
    %125 = vst [vmem:[%s124] sm:%s75] %v123
    %s126 = smul.addr 4, 7
    %s127 = scalar_lea.vmem [#allocation1], %s126
    %v128 = vld [vmem:[%s127] sm:%s75]
    %s129 = scalar_lea.vmem [#allocation0], 56
    %130 = vst [vmem:[%s129] sm:%s75] %v128
    %s131 = smul.addr 4, 6
    %s132 = scalar_lea.vmem [#allocation1], %s131
    %v133 = vld [vmem:[%s132] sm:%s75]
    %s134 = scalar_lea.vmem [#allocation0], 48
    %135 = vst [vmem:[%s134] sm:%s75] %v133
    %s136 = smul.addr 4, 5
    %s137 = scalar_lea.vmem [#allocation1], %s136
    %v138 = vld [vmem:[%s137] sm:%s75]
    %s139 = scalar_lea.vmem [#allocation0], 40
    %140 = vst [vmem:[%s139] sm:%s75] %v138
    %s141 = smul.addr 4, 4
    %s142 = scalar_lea.vmem [#allocation1], %s141
    %v143 = vld [vmem:[%s142] sm:%s75]
    %s144 = scalar_lea.vmem [#allocation0], 32
    %145 = vst [vmem:[%s144] sm:%s75] %v143
    %s146 = smul.addr 4, 3
    %s147 = scalar_lea.vmem [#allocation1], %s146
    %v148 = vld [vmem:[%s147] sm:%s75]
    %s149 = scalar_lea.vmem [#allocation0], 24
    %150 = vst [vmem:[%s149] sm:%s75] %v148
    %s151 = smul.addr 4, 2
    %s152 = scalar_lea.vmem [#allocation1], %s151
    %v153 = vld [vmem:[%s152] sm:%s75]
    %s154 = scalar_lea.vmem [#allocation0], 16
    %155 = vst [vmem:[%s154] sm:%s75] %v153
    %s156 = scalar_lea.vmem [#allocation1], 4
    %v157 = vld [vmem:[%s156] sm:%s75]
    %s158 = scalar_lea.vmem [#allocation0], 8
    %159 = vst [vmem:[%s158] sm:%s75] %v157
    %v160 = vld [vmem:[#allocation1] sm:%s75]
    %161 = vst [vmem:[#allocation0] sm:%s75] %v160
    %s162 = scalar_lea.vmem [#allocation0], 32
    %s163 = scalar_lea.vmem %s162, 7 [#allocation0]
    %v164 = vld [vmem:[%s163] ss:$-1 sm:$0xff]
    %v165 = vrot.slane %v164, 5
    %166 = vst [vmem:[#allocation2] sm:$0xff] %v165
    %s167 = scalar_lea.vmem %s162, 8 [#allocation0]
    %s168 = scalar_lea.vmem %s167, 7 [#allocation0]
    %v169 = vld [vmem:[%s168] ss:$-1 sm:$0xff]
    %v170 = vrot.slane %v169, 5
    %v171 = vlaneseq
    %v172 = vshrl.u32 %v171, 7
    %vm173 = vcmp.lt.s32.totalorder %v172, 3
    %174 = vst.msk [vmem:[#allocation2] sm:$0xff] %vm173, %v170
    %s175 = scalar_lea.vmem [#allocation2], 8
    %s176 = scalar_lea.vmem [#allocation0], 16
    %s177 = scalar_lea.vmem %s176, 7 [#allocation0]
    %v178 = vld [vmem:[%s177] ss:$-1 sm:$0xff]
    %v179 = vrot.slane %v178, 5
    %180 = vst [vmem:[%s175] sm:$0xff] %v179
    %s181 = scalar_lea.vmem %s176, 8 [#allocation0]
    %s182 = scalar_lea.vmem %s181, 7 [#allocation0]
    %v183 = vld [vmem:[%s182] ss:$-1 sm:$0xff]
    %v184 = vrot.slane %v183, 5
    %v185 = vlaneseq
    %v186 = vshrl.u32 %v185, 7
    %vm187 = vcmp.lt.s32.totalorder %v186, 3
    %188 = vst.msk [vmem:[%s175] sm:$0xff] %vm187, %v184
    %s189 = scalar_lea.vmem [#allocation2], 16
    %s190 = scalar_lea.vmem [#allocation0], 7
    %v191 = vld [vmem:[%s190] ss:$-1 sm:$0xff]
    %v192 = vrot.slane %v191, 5
    %193 = vst [vmem:[%s189] sm:$0xff] %v192
    %s194 = scalar_lea.vmem [#allocation0], 8
    %s195 = scalar_lea.vmem %s194, 7 [#allocation0]
    %v196 = vld [vmem:[%s195] ss:$-1 sm:$0xff]
    %v197 = vrot.slane %v196, 5
    %v198 = vlaneseq
    %v199 = vshrl.u32 %v198, 7
    %vm200 = vcmp.lt.s32.totalorder %v199, 3
    %201 = vst.msk [vmem:[%s189] sm:$0xff] %vm200, %v197
    %s202 = scalar_lea.vmem [#allocation2], 24
    %s203 = scalar_lea.vmem [#allocation0], 80
    %s204 = scalar_lea.vmem %s203, 7 [#allocation0]
    %v205 = vld [vmem:[%s204] ss:$-1 sm:$0xff]
    %v206 = vrot.slane %v205, 5
    %207 = vst [vmem:[%s202] sm:$0xff] %v206
    %s208 = scalar_lea.vmem %s203, 8 [#allocation0]
    %s209 = scalar_lea.vmem %s208, 7 [#allocation0]
    %v210 = vld [vmem:[%s209] ss:$-1 sm:$0xff]
    %v211 = vrot.slane %v210, 5
    %v212 = vlaneseq
    %v213 = vshrl.u32 %v212, 7
    %vm214 = vcmp.lt.s32.totalorder %v213, 3
    %215 = vst.msk [vmem:[%s202] sm:$0xff] %vm214, %v211
    %s216 = scalar_lea.vmem [#allocation2], 32
    %s217 = scalar_lea.vmem [#allocation0], 64
    %s218 = scalar_lea.vmem %s217, 7 [#allocation0]
    %v219 = vld [vmem:[%s218] ss:$-1 sm:$0xff]
    %v220 = vrot.slane %v219, 5
    %221 = vst [vmem:[%s216] sm:$0xff] %v220
    %s222 = scalar_lea.vmem %s217, 8 [#allocation0]
    %s223 = scalar_lea.vmem %s222, 7 [#allocation0]
    %v224 = vld [vmem:[%s223] ss:$-1 sm:$0xff]
    %v225 = vrot.slane %v224, 5
    %v226 = vlaneseq
    %v227 = vshrl.u32 %v226, 7
    %vm228 = vcmp.lt.s32.totalorder %v227, 3
    %229 = vst.msk [vmem:[%s216] sm:$0xff] %vm228, %v225
    %s230 = scalar_lea.vmem [#allocation2], 40
    %s231 = scalar_lea.vmem [#allocation0], 48
    %s232 = scalar_lea.vmem %s231, 7 [#allocation0]
    %v233 = vld [vmem:[%s232] ss:$-1 sm:$0xff]
    %v234 = vrot.slane %v233, 5
    %235 = vst [vmem:[%s230] sm:$0xff] %v234
    %s236 = scalar_lea.vmem %s231, 8 [#allocation0]
    %s237 = scalar_lea.vmem %s236, 7 [#allocation0]
    %v238 = vld [vmem:[%s237] ss:$-1 sm:$0xff]
    %v239 = vrot.slane %v238, 5
    %v240 = vlaneseq
    %v241 = vshrl.u32 %v240, 7
    %vm242 = vcmp.lt.s32.totalorder %v241, 3
    %243 = vst.msk [vmem:[%s230] sm:$0xff] %vm242, %v239
    %s244 = scalar_lea.vmem [#allocation2], 48
    %s245 = scalar_lea.vmem [#allocation0], 128
    %s246 = scalar_lea.vmem %s245, 7 [#allocation0]
    %v247 = vld [vmem:[%s246] ss:$-1 sm:$0xff]
    %v248 = vrot.slane %v247, 5
    %249 = vst [vmem:[%s244] sm:$0xff] %v248
    %s250 = scalar_lea.vmem %s245, 8 [#allocation0]
    %s251 = scalar_lea.vmem %s250, 7 [#allocation0]
    %v252 = vld [vmem:[%s251] ss:$-1 sm:$0xff]
    %v253 = vrot.slane %v252, 5
    %v254 = vlaneseq
    %v255 = vshrl.u32 %v254, 7
    %vm256 = vcmp.lt.s32.totalorder %v255, 3
    %257 = vst.msk [vmem:[%s244] sm:$0xff] %vm256, %v253
    %s258 = scalar_lea.vmem [#allocation2], 56
    %s259 = scalar_lea.vmem [#allocation0], 112
    %s260 = scalar_lea.vmem %s259, 7 [#allocation0]
    %v261 = vld [vmem:[%s260] ss:$-1 sm:$0xff]
    %v262 = vrot.slane %v261, 5
    %263 = vst [vmem:[%s258] sm:$0xff] %v262
    %s264 = scalar_lea.vmem %s259, 8 [#allocation0]
    %s265 = scalar_lea.vmem %s264, 7 [#allocation0]
    %v266 = vld [vmem:[%s265] ss:$-1 sm:$0xff]
    %v267 = vrot.slane %v266, 5
    %v268 = vlaneseq
    %v269 = vshrl.u32 %v268, 7
    %vm270 = vcmp.lt.s32.totalorder %v269, 3
    %271 = vst.msk [vmem:[%s258] sm:$0xff] %vm270, %v267
    %s272 = scalar_lea.vmem [#allocation2], 64
    %s273 = scalar_lea.vmem [#allocation0], 96
    %s274 = scalar_lea.vmem %s273, 7 [#allocation0]
    %v275 = vld [vmem:[%s274] ss:$-1 sm:$0xff]
    %v276 = vrot.slane %v275, 5
    %277 = vst [vmem:[%s272] sm:$0xff] %v276
    %s278 = scalar_lea.vmem %s273, 8 [#allocation0]
    %s279 = scalar_lea.vmem %s278, 7 [#allocation0]
    %v280 = vld [vmem:[%s279] ss:$-1 sm:$0xff]
    %v281 = vrot.slane %v280, 5
    %v282 = vlaneseq
    %v283 = vshrl.u32 %v282, 7
    %vm284 = vcmp.lt.s32.totalorder %v283, 3
    %285 = vst.msk [vmem:[%s272] sm:$0xff] %vm284, %v281
    %s287 = smul.u32 2, 2
    %s288 = sshllo.u32 0, %s287
    %s289 = sshrl.u32 %s287, 1
    %v290 = vld [vmem:[#allocation2] sm:%s288]
    %v291 = vpack.c.bf16 0.0, %v290
    %s292 = sshllo.u32 0, %s289
    %293 = vst [vmem:[#allocation3] sm:%s292] %v291
    %s294 = scalar_lea.vmem [#allocation2], 8
    %v295 = vld [vmem:[%s294] sm:%s288]
    %v296 = vpack.c.bf16 0.0, %v295
    %s297 = sshllo.u32 0, %s289
    %s298 = scalar_lea.vmem [#allocation3], 2
    %299 = vst [vmem:[%s298] sm:%s297] %v296
    %s300 = scalar_lea.vmem [#allocation2], 16
    %v301 = vld [vmem:[%s300] sm:%s288]
    %v302 = vpack.c.bf16 0.0, %v301
    %s303 = sshllo.u32 0, %s289
    %s304 = smul.addr 2, 2
    %s305 = scalar_lea.vmem [#allocation3], %s304
    %306 = vst [vmem:[%s305] sm:%s303] %v302
    %s307 = scalar_lea.vmem [#allocation2], 24
    %v308 = vld [vmem:[%s307] sm:%s288]
    %v309 = vpack.c.bf16 0.0, %v308
    %s310 = sshllo.u32 0, %s289
    %s311 = smul.addr 2, 3
    %s312 = scalar_lea.vmem [#allocation3], %s311
    %313 = vst [vmem:[%s312] sm:%s310] %v309
    %s314 = scalar_lea.vmem [#allocation2], 32
    %v315 = vld [vmem:[%s314] sm:%s288]
    %v316 = vpack.c.bf16 0.0, %v315
    %s317 = sshllo.u32 0, %s289
    %s318 = smul.addr 2, 4
    %s319 = scalar_lea.vmem [#allocation3], %s318
    %320 = vst [vmem:[%s319] sm:%s317] %v316
    %s321 = scalar_lea.vmem [#allocation2], 40
    %v322 = vld [vmem:[%s321] sm:%s288]
    %v323 = vpack.c.bf16 0.0, %v322
    %s324 = sshllo.u32 0, %s289
    %s325 = smul.addr 2, 5
    %s326 = scalar_lea.vmem [#allocation3], %s325
    %327 = vst [vmem:[%s326] sm:%s324] %v323
    %s328 = scalar_lea.vmem [#allocation2], 48
    %v329 = vld [vmem:[%s328] sm:%s288]
    %v330 = vpack.c.bf16 0.0, %v329
    %s331 = sshllo.u32 0, %s289
    %s332 = smul.addr 2, 6
    %s333 = scalar_lea.vmem [#allocation3], %s332
    %334 = vst [vmem:[%s333] sm:%s331] %v330
    %s335 = scalar_lea.vmem [#allocation2], 56
    %v336 = vld [vmem:[%s335] sm:%s288]
    %v337 = vpack.c.bf16 0.0, %v336
    %s338 = sshllo.u32 0, %s289
    %s339 = smul.addr 2, 7
    %s340 = scalar_lea.vmem [#allocation3], %s339
    %341 = vst [vmem:[%s340] sm:%s338] %v337
    %s342 = scalar_lea.vmem [#allocation2], 64
    %v343 = vld [vmem:[%s342] sm:%s288]
    %v344 = vpack.c.bf16 0.0, %v343
    %s345 = sshllo.u32 0, %s289
    %s346 = smul.addr 2, 8
    %s347 = scalar_lea.vmem [#allocation3], %s346
    %348 = vst [vmem:[%s347] sm:%s345] %v344
    // Predicated region
    $region39: #{reverse} parent=1 // pred_check
      _
    $region40: #{reverse} parent=1 // pred_check_branch
      %350 = sbr.rel (0) target = $region42
    $region41: #{reverse} parent=1 // pred_region
      // Predicated region
      $region43: #{reverse} parent=41 // pred_check
        _
      $region44: #{reverse} parent=41 // pred_check_branch
        %352 = sbr.rel target = $region46
      $region45: #{reverse} parent=41 // pred_region
        // Predicated region
        $region58: #{reverse} parent=45 // pred_check
          _
        $region59: #{reverse} parent=45 // pred_check_branch
          %383 = sbr.rel (0) target = $region61
        $region60: #{reverse} parent=45 // pred_region
          loop: start=0, step=1, limit=1
          $region62: #{reverse} parent=60 // loop_pre_header
            _
          $region63: #{reverse} parent=60 // loop_header
            %s385 = sphi 0, %s389
            %p386 = scmp.ge.s32.totalorder %s385, 1
            %s390 = sphi [#allocation3], [#allocation3]
            %s391 = sphi %s1, %s1
          $region64: #{reverse} parent=60 // loop_header_branch
            %388 = sbr.rel (%p386) target = $region68
          $region65: #{reverse} parent=60 // loop_body
            _
          $region66: #{reverse} parent=60 // loop_footer
            %s389 = sadd.s32 1, %s385
          $region67: #{reverse} parent=60 // loop_footer_branch
            %384 = sbr.rel target = $region63
          $region68: #{reverse} parent=60 // loop_exit
            _
          loop: start=0, step=1, limit=1
          $region69: #{reverse} parent=60 // loop_pre_header
            _
          $region70: #{reverse} parent=60 // loop_header
            %s394 = sphi 0, %s398
            %p395 = scmp.ge.s32.totalorder %s394, 1
            %s399 = sphi [#allocation3], [#allocation3]
            %s400 = sphi %s1, %s1
          $region71: #{reverse} parent=60 // loop_header_branch
            %397 = sbr.rel (%p395) target = $region75
          $region72: #{reverse} parent=60 // loop_body
            %v401 = vld [vmem:[%s399] sm:$0x3]
            %402 = vst [vmem:[%s400] sm:$0x3] %v401
            %v403 = vld [vmem:[%s399 + $0x2] sm:$0x3]
            %404 = vst [vmem:[%s400 + $0x2] sm:$0x3] %v403
            %v405 = vld [vmem:[%s399 + $0x4] sm:$0x3]
            %406 = vst [vmem:[%s400 + $0x4] sm:$0x3] %v405
            %v407 = vld [vmem:[%s399 + $0x6] sm:$0x3]
            %408 = vst [vmem:[%s400 + $0x6] sm:$0x3] %v407
            %v409 = vld [vmem:[%s399 + $0x8] sm:$0x3]
            %410 = vst [vmem:[%s400 + $0x8] sm:$0x3] %v409
            %v411 = vld [vmem:[%s399 + $0xa] sm:$0x3]
            %412 = vst [vmem:[%s400 + $0xa] sm:$0x3] %v411
            %v413 = vld [vmem:[%s399 + $0xc] sm:$0x3]
            %414 = vst [vmem:[%s400 + $0xc] sm:$0x3] %v413
            %v415 = vld [vmem:[%s399 + $0xe] sm:$0x3]
            %416 = vst [vmem:[%s400 + $0xe] sm:$0x3] %v415
            %v417 = vld [vmem:[%s399 + $0x10] sm:$0x3]
            %418 = vst [vmem:[%s400 + $0x10] sm:$0x3] %v417
          $region73: #{reverse} parent=60 // loop_footer
            %s398 = sadd.s32 1, %s394
          $region74: #{reverse} parent=60 // loop_footer_branch
            %393 = sbr.rel target = $region70
          $region75: #{reverse} parent=60 // loop_exit
            _
        $region61: #{reverse} parent=45 // pred_fallthru
          _
      $region46: #{reverse} parent=41 // pred_fallthru
        _
      // Predicated region
      $region47: #{reverse} parent=41 // pred_check
        _
      $region48: #{reverse} parent=41 // pred_check_branch
        %354 = sbr.rel (0) target = $region50
      $region49: #{reverse} parent=41 // pred_region
        loop: start=0, step=1, limit=1
        $region51: #{reverse} parent=49 // loop_pre_header
          _
        $region52: #{reverse} parent=49 // loop_header
          %s357 = sphi 0, %s361
          %p358 = scmp.ge.s32.totalorder %s357, 1
          %s362 = sphi [#allocation3], [#allocation3]
          %s363 = sphi %s1, %s1
        $region53: #{reverse} parent=49 // loop_header_branch
          %360 = sbr.rel (%p358) target = $region57
        $region54: #{reverse} parent=49 // loop_body
          %v364 = vld [vmem:[%s362] sm:$0x3]
          %365 = vst [vmem:[%s363] sm:$0x3] %v364
          %v366 = vld [vmem:[%s362 + $0x2] sm:$0x3]
          %367 = vst [vmem:[%s363 + $0x2] sm:$0x3] %v366
          %v368 = vld [vmem:[%s362 + $0x4] sm:$0x3]
          %369 = vst [vmem:[%s363 + $0x4] sm:$0x3] %v368
          %v370 = vld [vmem:[%s362 + $0x6] sm:$0x3]
          %371 = vst [vmem:[%s363 + $0x6] sm:$0x3] %v370
          %v372 = vld [vmem:[%s362 + $0x8] sm:$0x3]
          %373 = vst [vmem:[%s363 + $0x8] sm:$0x3] %v372
          %v374 = vld [vmem:[%s362 + $0xa] sm:$0x3]
          %375 = vst [vmem:[%s363 + $0xa] sm:$0x3] %v374
          %v376 = vld [vmem:[%s362 + $0xc] sm:$0x3]
          %377 = vst [vmem:[%s363 + $0xc] sm:$0x3] %v376
          %v378 = vld [vmem:[%s362 + $0xe] sm:$0x3]
          %379 = vst [vmem:[%s363 + $0xe] sm:$0x3] %v378
          %v380 = vld [vmem:[%s362 + $0x10] sm:$0x3]
          %381 = vst [vmem:[%s363 + $0x10] sm:$0x3] %v380
        $region55: #{reverse} parent=49 // loop_footer
          %s361 = sadd.s32 1, %s357
        $region56: #{reverse} parent=49 // loop_footer_branch
          %356 = sbr.rel target = $region52
        $region57: #{reverse} parent=49 // loop_exit
          _
      $region50: #{reverse} parent=41 // pred_fallthru
        _
    $region42: #{reverse} parent=1 // pred_fallthru
      _
    %419 = vnop

// kernel: tile.3
$region0: #{tile.3}
  %s0 = inlined_call_operand.vmem [shape: f32[4,8], index: 0, kind: input, shape index: {}]
  %s1 = inlined_call_operand.vmem [shape: f32[32,1], index: 1, kind: output, shape index: {}]
  $region1: #{tile.3} parent=0
    #allocation0 [shape = 'u8[4096]{0}', space=vmem, size = 0x1000, scoped, tag = 'scoped mem for input reshape']
    %s3 = sshllo.u32 0, 4
    %v4 = vld [vmem:[%s0] sm:%s3]
    %5 = vst [vmem:[#allocation0] sm:%s3] %v4
    %v6 = vld [vmem:[#allocation0] sm:$0xf]
    %vm7 = vcmask 7168
    %8 = vst.msk [vmem:[%s1] ss:$8 sm:$0xf] %vm7, %v6
    %v9 = vld [vmem:[#allocation0] sm:$0xf]
    %10 = vrot.lane.b32.xlu0 %v9, 127
    %v11 = vpop.permute.xlu0 %10
    %vm12 = vcmask 7168
    %s13 = scalar_lea.vmem %s1, 1
    %14 = vst.msk [vmem:[%s13] ss:$8 sm:$0xf] %vm12, %v11
    %v15 = vld [vmem:[#allocation0] sm:$0xf]
    %16 = vrot.lane.b32.xlu0 %v15, 126
    %v17 = vpop.permute.xlu0 %16
    %vm18 = vcmask 7168
    %s19 = scalar_lea.vmem %s1, 2
    %20 = vst.msk [vmem:[%s19] ss:$8 sm:$0xf] %vm18, %v17
    %v21 = vld [vmem:[#allocation0] sm:$0xf]
    %22 = vrot.lane.b32.xlu0 %v21, 125
    %v23 = vpop.permute.xlu0 %22
    %vm24 = vcmask 7168
    %s25 = scalar_lea.vmem %s1, 3
    %26 = vst.msk [vmem:[%s25] ss:$8 sm:$0xf] %vm24, %v23
    %v27 = vld [vmem:[#allocation0] sm:$0xf]
    %28 = vrot.lane.b32.xlu0 %v27, 124
    %v29 = vpop.permute.xlu0 %28
    %vm30 = vcmask 7168
    %s31 = scalar_lea.vmem %s1, 4
    %32 = vst.msk [vmem:[%s31] ss:$8 sm:$0xf] %vm30, %v29
    %v33 = vld [vmem:[#allocation0] sm:$0xf]
    %34 = vrot.lane.b32.xlu0 %v33, 123
    %v35 = vpop.permute.xlu0 %34
    %vm36 = vcmask 7168
    %s37 = scalar_lea.vmem %s1, 5
    %38 = vst.msk [vmem:[%s37] ss:$8 sm:$0xf] %vm36, %v35
    %v39 = vld [vmem:[#allocation0] sm:$0xf]
    %40 = vrot.lane.b32.xlu0 %v39, 122
    %v41 = vpop.permute.xlu0 %40
    %vm42 = vcmask 7168
    %s43 = scalar_lea.vmem %s1, 6
    %44 = vst.msk [vmem:[%s43] ss:$8 sm:$0xf] %vm42, %v41
    %v45 = vld [vmem:[#allocation0] sm:$0xf]
    %46 = vrot.lane.b32.xlu0 %v45, 121
    %v47 = vpop.permute.xlu0 %46
    %vm48 = vcmask 7168
    %s49 = scalar_lea.vmem %s1, 7
    %50 = vst.msk [vmem:[%s49] ss:$8 sm:$0xf] %vm48, %v47

// kernel: _lambda_.6
$region0: #{_lambda_.6}
  #allocation0 [shape = 'u32[]', space=smem, size = 0x4, offset = 0x4, fixed_abs, tag = 'smem constant byte address 0x4 - core index']
  #allocation1 [shape = 'u32[144,128]{1,0:T(1,128)}', space=vmem, size = 0x12000, scoped, tag = 'internal scratch']
  %s0 = inlined_call_operand.vmem [shape: f32[32,128], index: 0, kind: input, shape index: {}]
  %s1 = inlined_call_operand.vmem [shape: f32[32,1], index: 1, kind: input, shape index: {}]
  %s2 = inlined_call_operand.vmem [shape: f32[32,1], index: 2, kind: input, shape index: {}]
  %s3 = inlined_call_operand.vmem [shape: bf16[32,128], index: 3, kind: output, shape index: {}]
  %s4 = sld [smem:[#allocation0]]
  $region22: #{_lambda_.6} parent=0
    _
  %s6 = ssub.s32 1, %s4
  %s7 = scalar_select 0, %s6, %s4
  // Predicated region
  $region2: #{_lambda_.6} parent=0 // pred_check
    _
  $region3: #{_lambda_.6} parent=0 // pred_check_branch
    %9 = sbr.rel (0) target = $region5
  $region4: #{_lambda_.6} parent=0 // pred_region
    _
  $region5: #{_lambda_.6} parent=0 // pred_fallthru
    _
  // Predicated region
  $region6: #{_lambda_.6} parent=0 // pred_check
    _
  $region7: #{_lambda_.6} parent=0 // pred_check_branch
    %11 = sbr.rel (0) target = $region9
  $region8: #{_lambda_.6} parent=0 // pred_region
    _
  $region9: #{_lambda_.6} parent=0 // pred_fallthru
    _
  // Predicated region
  $region10: #{_lambda_.6} parent=0 // pred_check
    _
  $region11: #{_lambda_.6} parent=0 // pred_check_branch
    %13 = sbr.rel (0) target = $region13
  $region12: #{_lambda_.6} parent=0 // pred_region
    _
  $region13: #{_lambda_.6} parent=0 // pred_fallthru
    _
  %v14 = vld [vmem:[%s0] sm:$0xff]
  %v15 = vld [vmem:[%s0 + $0x8] sm:$0xff]
  %v16 = vld [vmem:[%s0 + $0x10] sm:$0xff]
  %v17 = vld [vmem:[%s0 + $0x18] sm:$0xff]
  %v18 = vld [vmem:[%s1] sm:$0xff]
  %v19 = vld [vmem:[%s1 + $0x8] sm:$0xff]
  %v20 = vld [vmem:[%s1 + $0x10] sm:$0xff]
  %v21 = vld [vmem:[%s1 + $0x18] sm:$0xff]
  %23 = vset.pattern.permute.xlu0 0
  %24 = vperm.xlu0 %23, %v18
  %v25 = vpop.permute.xlu0 %24
  %28 = vset.pattern.permute.xlu0 0
  %29 = vperm.xlu0 %28, %v19
  %v30 = vpop.permute.xlu0 %29
  %33 = vset.pattern.permute.xlu0 0
  %34 = vperm.xlu0 %33, %v20
  %v35 = vpop.permute.xlu0 %34
  %38 = vset.pattern.permute.xlu0 0
  %39 = vperm.xlu0 %38, %v21
  %v40 = vpop.permute.xlu0 %39
  %v42 = vmul.f32 %v14, %v25
  %v43 = vmul.f32 %v15, %v30
  %v44 = vmul.f32 %v16, %v35
  %v45 = vmul.f32 %v17, %v40
  %v46 = vld [vmem:[%s2] sm:$0xff]
  %v47 = vld [vmem:[%s2 + $0x8] sm:$0xff]
  %v48 = vld [vmem:[%s2 + $0x10] sm:$0xff]
  %v49 = vld [vmem:[%s2 + $0x18] sm:$0xff]
  %51 = vset.pattern.permute.xlu0 0
  %52 = vperm.xlu0 %51, %v46
  %v53 = vpop.permute.xlu0 %52
  %56 = vset.pattern.permute.xlu0 0
  %57 = vperm.xlu0 %56, %v47
  %v58 = vpop.permute.xlu0 %57
  %61 = vset.pattern.permute.xlu0 0
  %62 = vperm.xlu0 %61, %v48
  %v63 = vpop.permute.xlu0 %62
  %66 = vset.pattern.permute.xlu0 0
  %67 = vperm.xlu0 %66, %v49
  %v68 = vpop.permute.xlu0 %67
  %v70 = vadd.f32 %v42, %v53
  %v71 = vadd.f32 %v43, %v58
  %v72 = vadd.f32 %v44, %v63
  %v73 = vadd.f32 %v45, %v68
  %vm74 = vcmp.ge.f32.partialorder %v70, 0.0
  %vm75 = vcmp.ge.f32.partialorder %v71, 0.0
  %vm76 = vcmp.ge.f32.partialorder %v72, 0.0
  %vm77 = vcmp.ge.f32.partialorder %v73, 0.0
  %v78 = vmul.f32 %v70, 0.2
  %v79 = vmul.f32 %v71, 0.2
  %v80 = vmul.f32 %v72, 0.2
  %v81 = vmul.f32 %v73, 0.2
  %v82 = vsel %vm74, %v70, %v78
  %v83 = vsel %vm75, %v71, %v79
  %v84 = vsel %vm76, %v72, %v80
  %v85 = vsel %vm77, %v73, %v81
  %v86 = vpack.c.bf16 %v83, %v82
  %v87 = vpack.c.bf16 %v85, %v84
  %v90 = vunpack.c.l.b16 %v86
  %v91 = vunpack.c.h.b16 %v86
  %v92 = vunpack.c.l.b16 %v87
  %v93 = vunpack.c.h.b16 %v87
  %v94 = vpack.c.b16 %v90, %v90
  %v95 = vpack.c.b16 %v91, %v91
  %v96 = vpack.c.b16 %v92, %v92
  %v97 = vpack.c.b16 %v93, %v93
  %102 = vst [vmem:[%s3] sm:$0xf] %v94
  %103 = vst [vmem:[%s3 + $0x4] sm:$0xf] %v95
  %104 = vst [vmem:[%s3 + $0x8] sm:$0xf] %v96
  %105 = vst [vmem:[%s3 + $0xc] sm:$0xf] %v97
  // Predicated region
  $region14: #{_lambda_.6} parent=0 // pred_check
    _
  $region15: #{_lambda_.6} parent=0 // pred_check_branch
    %107 = sbr.rel (0) target = $region17
  $region16: #{_lambda_.6} parent=0 // pred_region
    _
  $region17: #{_lambda_.6} parent=0 // pred_fallthru
    _
  // Predicated region
  $region18: #{_lambda_.6} parent=0 // pred_check
    _
  $region19: #{_lambda_.6} parent=0 // pred_check_branch
    %109 = sbr.rel (0) target = $region21
  $region20: #{_lambda_.6} parent=0 // pred_region
    _
  $region21: #{_lambda_.6} parent=0 // pred_fallthru
    _

// kernel: _lambda_.5
$region0: #{_lambda_.5}
  #allocation0 [shape = 'u32[]', space=smem, size = 0x4, offset = 0x4, fixed_abs, tag = 'smem constant byte address 0x4 - core index']
  #allocation1 [shape = 'u32[144,128]{1,0:T(1,128)}', space=vmem, size = 0x12000, scoped, tag = 'internal scratch']
  %s0 = inlined_call_operand.vmem [shape: bf16[16,128], index: 0, kind: input, shape index: {}]
  %s1 = inlined_call_operand.vmem [shape: bf16[32,16], index: 1, kind: input, shape index: {}]
  %s2 = inlined_call_operand.vmem [shape: f32[32,1], index: 2, kind: input, shape index: {}]
  %s3 = inlined_call_operand.vmem [shape: f32[32,128], index: 3, kind: output, shape index: {0}]
  %s4 = inlined_call_operand.vmem [shape: f32[1,32,2], index: 4, kind: output, shape index: {1}]
  %5 = xla_tuple %s3, %s4
  %s6 = sld [smem:[#allocation0]]
  $region30: #{_lambda_.5} parent=0
    _
  %s8 = ssub.s32 1, %s6
  %s9 = scalar_select 0, %s8, %s6
  // Predicated region
  $region2: #{_lambda_.5} parent=0 // pred_check
    _
  $region3: #{_lambda_.5} parent=0 // pred_check_branch
    %11 = sbr.rel (0) target = $region5
  $region4: #{_lambda_.5} parent=0 // pred_region
    _
  $region5: #{_lambda_.5} parent=0 // pred_fallthru
    _
  // Predicated region
  $region6: #{_lambda_.5} parent=0 // pred_check
    _
  $region7: #{_lambda_.5} parent=0 // pred_check_branch
    %13 = sbr.rel (0) target = $region9
  $region8: #{_lambda_.5} parent=0 // pred_region
    _
  $region9: #{_lambda_.5} parent=0 // pred_fallthru
    _
  // Predicated region
  $region10: #{_lambda_.5} parent=0 // pred_check
    _
  $region11: #{_lambda_.5} parent=0 // pred_check_branch
    %15 = sbr.rel (0) target = $region13
  $region12: #{_lambda_.5} parent=0 // pred_region
    _
  $region13: #{_lambda_.5} parent=0 // pred_fallthru
    _
  %v17 = vld [vmem:[%s1] sm:$0xf]
  %v18 = vld [vmem:[%s1 + $0x4] sm:$0xf]
  %v19 = vld [vmem:[%s1 + $0x8] sm:$0xf]
  %v20 = vld [vmem:[%s1 + $0xc] sm:$0xf]
  %v21 = vld [vmem:[%s0] sm:$0xf]
  %v22 = vld [vmem:[%s0 + $0x4] sm:$0xf]
  %v23 = vld [vmem:[%s2] sm:$0xff]
  %v24 = vld [vmem:[%s2 + $0x8] sm:$0xff]
  %v25 = vld [vmem:[%s2 + $0x10] sm:$0xff]
  %v26 = vld [vmem:[%s2 + $0x18] sm:$0xff]
  %28 = vset.pattern.permute.xlu0 0
  %29 = vperm.xlu0 %28, %v23
  %v30 = vpop.permute.xlu0 %29
  %33 = vset.pattern.permute.xlu0 0
  %34 = vperm.xlu0 %33, %v24
  %v35 = vpop.permute.xlu0 %34
  %38 = vset.pattern.permute.xlu0 0
  %39 = vperm.xlu0 %38, %v25
  %v40 = vpop.permute.xlu0 %39
  %43 = vset.pattern.permute.xlu0 0
  %44 = vperm.xlu0 %43, %v26
  %v45 = vpop.permute.xlu0 %44
  %v51 = vunpack.c.l.b16 %v17
  %v52 = vunpack.c.l.b16 %v18
  %v53 = vunpack.c.l.b16 %v19
  %v54 = vunpack.c.l.b16 %v20
  %v55 = vpack.c.b16 %v52, %v51
  %v56 = vpack.c.b16 %v54, %v53
  %v59 = vunpack.c.l.b16 %v21
  %v60 = vunpack.c.l.b16 %v22
  %v61 = vpack.c.b16 %v60, %v59
  %vm63 = vcmask 130048
  %v65 = vsel %vm63, %v55, 0
  %v68 = vsel %vm63, %v56, 0
  %70 = vmatprep.subr.bf16.mxu0 0
  %71 = vmatpush1.bf16.msra.mxu0 %v61
  %72 = vmatprep.subr.bf16.mxu0 0
  %73 = vmatpush1.bf16.msra.mxu0 0
  %74 = vmatprep.subr.bf16.mxu0 0
  %75 = vmatpush1.bf16.msra.mxu0 0
  %76 = vmatprep.subr.bf16.mxu0 0
  %77 = vmatpush1.bf16.msra.mxu0 0
  %78 = vmatprep.subr.bf16.mxu0 0
  %79 = vmatpush1.bf16.msra.mxu0 0
  %80 = vmatprep.subr.bf16.mxu0 0
  %81 = vmatpush1.bf16.msra.mxu0 0
  %82 = vmatprep.subr.bf16.mxu0 0
  %83 = vmatpush1.bf16.msra.mxu0 0
  %84 = vmatprep.subr.bf16.mxu0 0
  %85 = vmatpush1.bf16.msra.mxu0 0
  %86 = vmatprep.subr.bf16.mxu0 0
  %87 = vmatpush1.bf16.msra.mxu0 0
  %88 = vmatprep.subr.bf16.mxu0 0
  %89 = vmatpush1.bf16.msra.mxu0 0
  %90 = vmatprep.subr.bf16.mxu0 0
  %91 = vmatpush1.bf16.msra.mxu0 0
  %92 = vmatprep.subr.bf16.mxu0 0
  %93 = vmatpush1.bf16.msra.mxu0 0
  %94 = vmatprep.subr.bf16.mxu0 0
  %95 = vmatpush1.bf16.msra.mxu0 0
  %96 = vmatprep.subr.bf16.mxu0 0
  %97 = vmatpush1.bf16.msra.mxu0 0
  %98 = vmatprep.subr.bf16.mxu0 0
  %99 = vmatpush1.bf16.msra.mxu0 0
  %100 = vmatprep.subr.bf16.mxu0 0
  %101 = vmatpush1.bf16.msra.mxu0 0
  %102 = vmatprep.mubr.bf16.mxu0 0
  %103 = vmatmul.mubr.bf16.gmra.mrb[0].mxu0 %v65
  %v104 = vpop.f32.mrb[0].mxu0
  %v105 = vadd.f32 %v30, %v104
  %v106 = vpop.f32.mrb[0].mxu0
  %v107 = vpop.f32.mrb[0].mxu0
  %v108 = vadd.f32 %v35, %v107
  %v109 = vpop.f32.mrb[0].mxu0
  %110 = vmatprep.mubr.bf16.mxu0 0
  %111 = vmatmul.mubr.bf16.gmra.mrb[0].mxu0 %v68
  %v112 = vpop.f32.mrb[0].mxu0
  %v113 = vadd.f32 %v40, %v112
  %v114 = vpop.f32.mrb[0].mxu0
  %v115 = vpop.f32.mrb[0].mxu0
  %v116 = vadd.f32 %v45, %v115
  %v117 = vpop.f32.mrb[0].mxu0
  %118 = vdwg.mxu0
  %119 = vst [vmem:[%s3] sm:$0xff] %v105
  %120 = vst [vmem:[%s3 + $0x8] sm:$0xff] %v108
  %121 = vst [vmem:[%s3 + $0x10] sm:$0xff] %v113
  %122 = vst [vmem:[%s3 + $0x18] sm:$0xff] %v116
  %s123 = smul.u32 0, 128
  %v124 = vlaneseq
  %v125 = vand.u32 %v124, 127
  %v126 = vstv %s123
  %v127 = vadd.s32 %v126, %v125
  %vm128 = vcmp.lt.s32.totalorder %v127, 50
  %v129 = vsel %vm128, %v105, 0.0
  %v130 = vsel %vm128, %v108, 0.0
  %v131 = vsel %vm128, %v113, 0.0
  %v132 = vsel %vm128, %v116, 0.0
  %133 = vadd.xlane.f32.xlu0 %v129
  %v134 = vpop.xlane.xlu0 %133
  %135 = vadd.xlane.f32.xlu0 %v130
  %v136 = vpop.xlane.xlu0 %135
  %137 = vadd.xlane.f32.xlu0 %v131
  %v138 = vpop.xlane.xlu0 %137
  %139 = vadd.xlane.f32.xlu0 %v132
  %v140 = vpop.xlane.xlu0 %139
  %v141 = vmul.f32 %v129, %v129
  %v142 = vmul.f32 %v130, %v130
  %v143 = vmul.f32 %v131, %v131
  %v144 = vmul.f32 %v132, %v132
  %145 = vadd.xlane.f32.xlu0 %v141
  %v146 = vpop.xlane.xlu0 %145
  %147 = vadd.xlane.f32.xlu0 %v142
  %v148 = vpop.xlane.xlu0 %147
  %149 = vadd.xlane.f32.xlu0 %v143
  %v150 = vpop.xlane.xlu0 %149
  %151 = vadd.xlane.f32.xlu0 %v144
  %v152 = vpop.xlane.xlu0 %151
  %vm153 = vcmask 7168
  %v154 = vsel %vm153, %v134, %v146
  %v155 = vsel %vm153, %v136, %v148
  %v156 = vsel %vm153, %v138, %v150
  %v157 = vsel %vm153, %v140, %v152
  %vm158 = vcmask 15360
  %159 = vst.msk [vmem:[%s4] sm:$0xff] %vm158, %v154
  %160 = vst.msk [vmem:[%s4 + $0x8] sm:$0xff] %vm158, %v155
  %161 = vst.msk [vmem:[%s4 + $0x10] sm:$0xff] %vm158, %v156
  %162 = vst.msk [vmem:[%s4 + $0x18] sm:$0xff] %vm158, %v157
  // Predicated region
  $region14: #{_lambda_.5} parent=0 // pred_check
    _
  $region15: #{_lambda_.5} parent=0 // pred_check_branch
    %164 = sbr.rel (0) target = $region17
  $region16: #{_lambda_.5} parent=0 // pred_region
    _
  $region17: #{_lambda_.5} parent=0 // pred_fallthru
    _
  // Predicated region
  $region18: #{_lambda_.5} parent=0 // pred_check
    _
  $region19: #{_lambda_.5} parent=0 // pred_check_branch
    %166 = sbr.rel (0) target = $region21
  $region20: #{_lambda_.5} parent=0 // pred_region
    _
  $region21: #{_lambda_.5} parent=0 // pred_fallthru
    _
  // Predicated region
  $region22: #{_lambda_.5} parent=0 // pred_check
    _
  $region23: #{_lambda_.5} parent=0 // pred_check_branch
    %168 = sbr.rel (0) target = $region25
  $region24: #{_lambda_.5} parent=0 // pred_region
    _
  $region25: #{_lambda_.5} parent=0 // pred_fallthru
    _
  // Predicated region
  $region26: #{_lambda_.5} parent=0 // pred_check
    _
  $region27: #{_lambda_.5} parent=0 // pred_check_branch
    %170 = sbr.rel (0) target = $region29
  $region28: #{_lambda_.5} parent=0 // pred_region
    _
  $region29: #{_lambda_.5} parent=0 // pred_fallthru
    _

// kernel: _lambda_.7
$region0: #{_lambda_.7}
  #allocation0 [shape = 'u32[]', space=smem, size = 0x4, offset = 0x4, fixed_abs, tag = 'smem constant byte address 0x4 - core index']
  #allocation1 [shape = 'u32[144,128]{1,0:T(1,128)}', space=vmem, size = 0x12000, scoped, tag = 'internal scratch']
  %s0 = inlined_call_operand.vmem [shape: bf16[32,256], index: 0, kind: input, shape index: {}]
  %s1 = inlined_call_operand.vmem [shape: bf16[32,32], index: 1, kind: input, shape index: {}]
  %s2 = inlined_call_operand.vmem [shape: f32[32,1], index: 2, kind: input, shape index: {}]
  %s3 = inlined_call_operand.vmem [shape: f32[32,256], index: 3, kind: output, shape index: {0}]
  %s4 = inlined_call_operand.vmem [shape: f32[1,32,2], index: 4, kind: output, shape index: {1}]
  %5 = xla_tuple %s3, %s4
  %s6 = sld [smem:[#allocation0]]
  $region30: #{_lambda_.7} parent=0
    _
  %s8 = ssub.s32 1, %s6
  %s9 = scalar_select 0, %s8, %s6
  // Predicated region
  $region2: #{_lambda_.7} parent=0 // pred_check
    _
  $region3: #{_lambda_.7} parent=0 // pred_check_branch
    %11 = sbr.rel (0) target = $region5
  $region4: #{_lambda_.7} parent=0 // pred_region
    _
  $region5: #{_lambda_.7} parent=0 // pred_fallthru
    _
  // Predicated region
  $region6: #{_lambda_.7} parent=0 // pred_check
    _
  $region7: #{_lambda_.7} parent=0 // pred_check_branch
    %13 = sbr.rel (0) target = $region9
  $region8: #{_lambda_.7} parent=0 // pred_region
    _
  $region9: #{_lambda_.7} parent=0 // pred_fallthru
    _
  // Predicated region
  $region10: #{_lambda_.7} parent=0 // pred_check
    _
  $region11: #{_lambda_.7} parent=0 // pred_check_branch
    %15 = sbr.rel (0) target = $region13
  $region12: #{_lambda_.7} parent=0 // pred_region
    _
  $region13: #{_lambda_.7} parent=0 // pred_fallthru
    _
  %v17 = vld [vmem:[%s1] sm:$0xf]
  %v18 = vld [vmem:[%s1 + $0x4] sm:$0xf]
  %v19 = vld [vmem:[%s1 + $0x8] sm:$0xf]
  %v20 = vld [vmem:[%s1 + $0xc] sm:$0xf]
  %v21 = vld [vmem:[%s0] sm:$0xff]
  %v22 = vld [vmem:[%s0 + $0x8] sm:$0xff]
  %v23 = vld [vmem:[%s0 + $0x10] sm:$0xff]
  %v24 = vld [vmem:[%s0 + $0x18] sm:$0xff]
  %v25 = vld [vmem:[%s2] sm:$0xff]
  %v26 = vld [vmem:[%s2 + $0x8] sm:$0xff]
  %v27 = vld [vmem:[%s2 + $0x10] sm:$0xff]
  %v28 = vld [vmem:[%s2 + $0x18] sm:$0xff]
  %30 = vset.pattern.permute.xlu0 0
  %31 = vperm.xlu0 %30, %v25
  %v32 = vpop.permute.xlu0 %31
  %35 = vset.pattern.permute.xlu0 0
  %36 = vperm.xlu0 %35, %v26
  %v37 = vpop.permute.xlu0 %36
  %40 = vset.pattern.permute.xlu0 0
  %41 = vperm.xlu0 %40, %v27
  %v42 = vpop.permute.xlu0 %41
  %45 = vset.pattern.permute.xlu0 0
  %46 = vperm.xlu0 %45, %v28
  %v47 = vpop.permute.xlu0 %46
  %v53 = vunpack.c.l.b16 %v17
  %v54 = vunpack.c.l.b16 %v18
  %v55 = vunpack.c.l.b16 %v19
  %v56 = vunpack.c.l.b16 %v20
  %v57 = vpack.c.b16 %v54, %v53
  %v58 = vpack.c.b16 %v56, %v55
  %v63 = vunpack.c.l.b16 %v21
  %v64 = vunpack.c.h.b16 %v21
  %v65 = vunpack.c.l.b16 %v22
  %v66 = vunpack.c.h.b16 %v22
  %v67 = vunpack.c.l.b16 %v23
  %v68 = vunpack.c.h.b16 %v23
  %v69 = vunpack.c.l.b16 %v24
  %v70 = vunpack.c.h.b16 %v24
  %v71 = vpack.c.b16 %v65, %v63
  %v72 = vpack.c.b16 %v66, %v64
  %v73 = vpack.c.b16 %v69, %v67
  %v74 = vpack.c.b16 %v70, %v68
  %vm79 = vcmask 261120
  %v81 = vsel %vm79, %v57, 0
  %v84 = vsel %vm79, %v58, 0
  %86 = vmatprep.subr.bf16.mxu0 %v72
  %87 = vmatpush1.bf16.msra.mxu0 %v71
  %88 = vmatprep.subr.bf16.mxu0 %v74
  %89 = vmatpush1.bf16.msra.mxu0 %v73
  %90 = vmatprep.subr.bf16.mxu0 0
  %91 = vmatpush1.bf16.msra.mxu0 0
  %92 = vmatprep.subr.bf16.mxu0 0
  %93 = vmatpush1.bf16.msra.mxu0 0
  %94 = vmatprep.subr.bf16.mxu0 0
  %95 = vmatpush1.bf16.msra.mxu0 0
  %96 = vmatprep.subr.bf16.mxu0 0
  %97 = vmatpush1.bf16.msra.mxu0 0
  %98 = vmatprep.subr.bf16.mxu0 0
  %99 = vmatpush1.bf16.msra.mxu0 0
  %100 = vmatprep.subr.bf16.mxu0 0
  %101 = vmatpush1.bf16.msra.mxu0 0
  %102 = vmatprep.subr.bf16.mxu0 0
  %103 = vmatpush1.bf16.msra.mxu0 0
  %104 = vmatprep.subr.bf16.mxu0 0
  %105 = vmatpush1.bf16.msra.mxu0 0
  %106 = vmatprep.subr.bf16.mxu0 0
  %107 = vmatpush1.bf16.msra.mxu0 0
  %108 = vmatprep.subr.bf16.mxu0 0
  %109 = vmatpush1.bf16.msra.mxu0 0
  %110 = vmatprep.subr.bf16.mxu0 0
  %111 = vmatpush1.bf16.msra.mxu0 0
  %112 = vmatprep.subr.bf16.mxu0 0
  %113 = vmatpush1.bf16.msra.mxu0 0
  %114 = vmatprep.subr.bf16.mxu0 0
  %115 = vmatpush1.bf16.msra.mxu0 0
  %116 = vmatprep.subr.bf16.mxu0 0
  %117 = vmatpush1.bf16.msra.mxu0 0
  %118 = vmatprep.mubr.bf16.mxu0 0
  %119 = vmatmul.mubr.bf16.gmra.mrb[0].mxu0 %v81
  %v120 = vpop.f32.mrb[0].mxu0
  %v121 = vadd.f32 %v32, %v120
  %v122 = vpop.f32.mrb[0].mxu0
  %v123 = vadd.f32 %v32, %v122
  %v124 = vpop.f32.mrb[0].mxu0
  %v125 = vadd.f32 %v37, %v124
  %v126 = vpop.f32.mrb[0].mxu0
  %v127 = vadd.f32 %v37, %v126
  %128 = vmatprep.mubr.bf16.mxu0 0
  %129 = vmatmul.mubr.bf16.gmra.mrb[0].mxu0 %v84
  %v130 = vpop.f32.mrb[0].mxu0
  %v131 = vadd.f32 %v42, %v130
  %v132 = vpop.f32.mrb[0].mxu0
  %v133 = vadd.f32 %v42, %v132
  %v134 = vpop.f32.mrb[0].mxu0
  %v135 = vadd.f32 %v47, %v134
  %v136 = vpop.f32.mrb[0].mxu0
  %v137 = vadd.f32 %v47, %v136
  %138 = vdwg.mxu0
  %139 = vst [vmem:[%s3] sm:$0xff] %v121
  %140 = vst [vmem:[%s3 + $0x8] sm:$0xff] %v123
  %141 = vst [vmem:[%s3 + $0x10] sm:$0xff] %v125
  %142 = vst [vmem:[%s3 + $0x18] sm:$0xff] %v127
  %143 = vst [vmem:[%s3 + $0x20] sm:$0xff] %v131
  %144 = vst [vmem:[%s3 + $0x28] sm:$0xff] %v133
  %145 = vst [vmem:[%s3 + $0x30] sm:$0xff] %v135
  %146 = vst [vmem:[%s3 + $0x38] sm:$0xff] %v137
  %s147 = smul.u32 0, 256
  %v148 = vlaneseq
  %v149 = vand.u32 %v148, 127
  %v150 = vadd.s32 %v149, 128
  %v151 = vstv %s147
  %v152 = vadd.s32 %v151, %v149
  %v153 = vadd.s32 %v151, %v150
  %vm154 = vcmp.lt.s32.totalorder %v152, 242
  %vm155 = vcmp.lt.s32.totalorder %v153, 242
  %v156 = vsel %vm154, %v121, 0.0
  %v157 = vsel %vm155, %v123, 0.0
  %v158 = vsel %vm154, %v125, 0.0
  %v159 = vsel %vm155, %v127, 0.0
  %v160 = vsel %vm154, %v131, 0.0
  %v161 = vsel %vm155, %v133, 0.0
  %v162 = vsel %vm154, %v135, 0.0
  %v163 = vsel %vm155, %v137, 0.0
  %v164 = vadd.f32 %v156, %v157
  %165 = vadd.xlane.f32.xlu0 %v164
  %v166 = vpop.xlane.xlu0 %165
  %v167 = vadd.f32 %v158, %v159
  %168 = vadd.xlane.f32.xlu0 %v167
  %v169 = vpop.xlane.xlu0 %168
  %v170 = vadd.f32 %v160, %v161
  %171 = vadd.xlane.f32.xlu0 %v170
  %v172 = vpop.xlane.xlu0 %171
  %v173 = vadd.f32 %v162, %v163
  %174 = vadd.xlane.f32.xlu0 %v173
  %v175 = vpop.xlane.xlu0 %174
  %v176 = vmul.f32 %v156, %v156
  %v177 = vmul.f32 %v157, %v157
  %v178 = vmul.f32 %v158, %v158
  %v179 = vmul.f32 %v159, %v159
  %v180 = vmul.f32 %v160, %v160
  %v181 = vmul.f32 %v161, %v161
  %v182 = vmul.f32 %v162, %v162
  %v183 = vmul.f32 %v163, %v163
  %v184 = vadd.f32 %v176, %v177
  %185 = vadd.xlane.f32.xlu0 %v184
  %v186 = vpop.xlane.xlu0 %185
  %v187 = vadd.f32 %v178, %v179
  %188 = vadd.xlane.f32.xlu0 %v187
  %v189 = vpop.xlane.xlu0 %188
  %v190 = vadd.f32 %v180, %v181
  %191 = vadd.xlane.f32.xlu0 %v190
  %v192 = vpop.xlane.xlu0 %191
  %v193 = vadd.f32 %v182, %v183
  %194 = vadd.xlane.f32.xlu0 %v193
  %v195 = vpop.xlane.xlu0 %194
  %vm196 = vcmask 7168
  %v197 = vsel %vm196, %v166, %v186
  %v198 = vsel %vm196, %v169, %v189
  %v199 = vsel %vm196, %v172, %v192
  %v200 = vsel %vm196, %v175, %v195
  %vm201 = vcmask 15360
  %202 = vst.msk [vmem:[%s4] sm:$0xff] %vm201, %v197
  %203 = vst.msk [vmem:[%s4 + $0x8] sm:$0xff] %vm201, %v198
  %204 = vst.msk [vmem:[%s4 + $0x10] sm:$0xff] %vm201, %v199
  %205 = vst.msk [vmem:[%s4 + $0x18] sm:$0xff] %vm201, %v200
  // Predicated region
  $region14: #{_lambda_.7} parent=0 // pred_check
    _
  $region15: #{_lambda_.7} parent=0 // pred_check_branch
    %207 = sbr.rel (0) target = $region17
  $region16: #{_lambda_.7} parent=0 // pred_region
    _
  $region17: #{_lambda_.7} parent=0 // pred_fallthru
    _
  // Predicated region
  $region18: #{_lambda_.7} parent=0 // pred_check
    _
  $region19: #{_lambda_.7} parent=0 // pred_check_branch
    %209 = sbr.rel (0) target = $region21
  $region20: #{_lambda_.7} parent=0 // pred_region
    _
  $region21: #{_lambda_.7} parent=0 // pred_fallthru
    _
  // Predicated region
  $region22: #{_lambda_.7} parent=0 // pred_check
    _
  $region23: #{_lambda_.7} parent=0 // pred_check_branch
    %211 = sbr.rel (0) target = $region25
  $region24: #{_lambda_.7} parent=0 // pred_region
    _
  $region25: #{_lambda_.7} parent=0 // pred_fallthru
    _
  // Predicated region
  $region26: #{_lambda_.7} parent=0 // pred_check
    _
  $region27: #{_lambda_.7} parent=0 // pred_check_branch
    %213 = sbr.rel (0) target = $region29
  $region28: #{_lambda_.7} parent=0 // pred_region
    _
  $region29: #{_lambda_.7} parent=0 // pred_fallthru
    _

// kernel: _lambda_.8
$region0: #{_lambda_.8}
  #allocation0 [shape = 'u32[]', space=smem, size = 0x4, offset = 0x4, fixed_abs, tag = 'smem constant byte address 0x4 - core index']
  #allocation1 [shape = 'u32[144,128]{1,0:T(1,128)}', space=vmem, size = 0x12000, scoped, tag = 'internal scratch']
  %s0 = inlined_call_operand.vmem [shape: f32[32,256], index: 0, kind: input, shape index: {}]
  %s1 = inlined_call_operand.vmem [shape: f32[32,1], index: 1, kind: input, shape index: {}]
  %s2 = inlined_call_operand.vmem [shape: f32[32,1], index: 2, kind: input, shape index: {}]
  %s3 = inlined_call_operand.vmem [shape: bf16[32,256], index: 3, kind: output, shape index: {}]
  %s4 = sld [smem:[#allocation0]]
  $region22: #{_lambda_.8} parent=0
    _
  %s6 = ssub.s32 1, %s4
  %s7 = scalar_select 0, %s6, %s4
  // Predicated region
  $region2: #{_lambda_.8} parent=0 // pred_check
    _
  $region3: #{_lambda_.8} parent=0 // pred_check_branch
    %9 = sbr.rel (0) target = $region5
  $region4: #{_lambda_.8} parent=0 // pred_region
    _
  $region5: #{_lambda_.8} parent=0 // pred_fallthru
    _
  // Predicated region
  $region6: #{_lambda_.8} parent=0 // pred_check
    _
  $region7: #{_lambda_.8} parent=0 // pred_check_branch
    %11 = sbr.rel (0) target = $region9
  $region8: #{_lambda_.8} parent=0 // pred_region
    _
  $region9: #{_lambda_.8} parent=0 // pred_fallthru
    _
  // Predicated region
  $region10: #{_lambda_.8} parent=0 // pred_check
    _
  $region11: #{_lambda_.8} parent=0 // pred_check_branch
    %13 = sbr.rel (0) target = $region13
  $region12: #{_lambda_.8} parent=0 // pred_region
    _
  $region13: #{_lambda_.8} parent=0 // pred_fallthru
    _
  %v14 = vld [vmem:[%s0] sm:$0xff]
  %v15 = vld [vmem:[%s0 + $0x8] sm:$0xff]
  %v16 = vld [vmem:[%s0 + $0x10] sm:$0xff]
  %v17 = vld [vmem:[%s0 + $0x18] sm:$0xff]
  %v18 = vld [vmem:[%s0 + $0x20] sm:$0xff]
  %v19 = vld [vmem:[%s0 + $0x28] sm:$0xff]
  %v20 = vld [vmem:[%s0 + $0x30] sm:$0xff]
  %v21 = vld [vmem:[%s0 + $0x38] sm:$0xff]
  %v22 = vld [vmem:[%s1] sm:$0xff]
  %v23 = vld [vmem:[%s1 + $0x8] sm:$0xff]
  %v24 = vld [vmem:[%s1 + $0x10] sm:$0xff]
  %v25 = vld [vmem:[%s1 + $0x18] sm:$0xff]
  %27 = vset.pattern.permute.xlu0 0
  %28 = vperm.xlu0 %27, %v22
  %v29 = vpop.permute.xlu0 %28
  %32 = vset.pattern.permute.xlu0 0
  %33 = vperm.xlu0 %32, %v23
  %v34 = vpop.permute.xlu0 %33
  %37 = vset.pattern.permute.xlu0 0
  %38 = vperm.xlu0 %37, %v24
  %v39 = vpop.permute.xlu0 %38
  %42 = vset.pattern.permute.xlu0 0
  %43 = vperm.xlu0 %42, %v25
  %v44 = vpop.permute.xlu0 %43
  %v46 = vmul.f32 %v14, %v29
  %v47 = vmul.f32 %v15, %v29
  %v48 = vmul.f32 %v16, %v34
  %v49 = vmul.f32 %v17, %v34
  %v50 = vmul.f32 %v18, %v39
  %v51 = vmul.f32 %v19, %v39
  %v52 = vmul.f32 %v20, %v44
  %v53 = vmul.f32 %v21, %v44
  %v54 = vld [vmem:[%s2] sm:$0xff]
  %v55 = vld [vmem:[%s2 + $0x8] sm:$0xff]
  %v56 = vld [vmem:[%s2 + $0x10] sm:$0xff]
  %v57 = vld [vmem:[%s2 + $0x18] sm:$0xff]
  %59 = vset.pattern.permute.xlu0 0
  %60 = vperm.xlu0 %59, %v54
  %v61 = vpop.permute.xlu0 %60
  %64 = vset.pattern.permute.xlu0 0
  %65 = vperm.xlu0 %64, %v55
  %v66 = vpop.permute.xlu0 %65
  %69 = vset.pattern.permute.xlu0 0
  %70 = vperm.xlu0 %69, %v56
  %v71 = vpop.permute.xlu0 %70
  %74 = vset.pattern.permute.xlu0 0
  %75 = vperm.xlu0 %74, %v57
  %v76 = vpop.permute.xlu0 %75
  %v78 = vadd.f32 %v46, %v61
  %v79 = vadd.f32 %v47, %v61
  %v80 = vadd.f32 %v48, %v66
  %v81 = vadd.f32 %v49, %v66
  %v82 = vadd.f32 %v50, %v71
  %v83 = vadd.f32 %v51, %v71
  %v84 = vadd.f32 %v52, %v76
  %v85 = vadd.f32 %v53, %v76
  %vm86 = vcmp.ge.f32.partialorder %v78, 0.0
  %vm87 = vcmp.ge.f32.partialorder %v79, 0.0
  %vm88 = vcmp.ge.f32.partialorder %v80, 0.0
  %vm89 = vcmp.ge.f32.partialorder %v81, 0.0
  %vm90 = vcmp.ge.f32.partialorder %v82, 0.0
  %vm91 = vcmp.ge.f32.partialorder %v83, 0.0
  %vm92 = vcmp.ge.f32.partialorder %v84, 0.0
  %vm93 = vcmp.ge.f32.partialorder %v85, 0.0
  %v94 = vmul.f32 %v78, 0.2
  %v95 = vmul.f32 %v79, 0.2
  %v96 = vmul.f32 %v80, 0.2
  %v97 = vmul.f32 %v81, 0.2
  %v98 = vmul.f32 %v82, 0.2
  %v99 = vmul.f32 %v83, 0.2
  %v100 = vmul.f32 %v84, 0.2
  %v101 = vmul.f32 %v85, 0.2
  %v102 = vsel %vm86, %v78, %v94
  %v103 = vsel %vm87, %v79, %v95
  %v104 = vsel %vm88, %v80, %v96
  %v105 = vsel %vm89, %v81, %v97
  %v106 = vsel %vm90, %v82, %v98
  %v107 = vsel %vm91, %v83, %v99
  %v108 = vsel %vm92, %v84, %v100
  %v109 = vsel %vm93, %v85, %v101
  %v110 = vpack.c.bf16 %v104, %v102
  %v111 = vpack.c.bf16 %v105, %v103
  %v112 = vpack.c.bf16 %v108, %v106
  %v113 = vpack.c.bf16 %v109, %v107
  %v118 = vunpack.c.l.b16 %v110
  %v119 = vunpack.c.l.b16 %v111
  %v120 = vunpack.c.h.b16 %v110
  %v121 = vunpack.c.h.b16 %v111
  %v122 = vunpack.c.l.b16 %v112
  %v123 = vunpack.c.l.b16 %v113
  %v124 = vunpack.c.h.b16 %v112
  %v125 = vunpack.c.h.b16 %v113
  %v126 = vpack.c.b16 %v119, %v118
  %v127 = vpack.c.b16 %v121, %v120
  %v128 = vpack.c.b16 %v123, %v122
  %v129 = vpack.c.b16 %v125, %v124
  %134 = vst [vmem:[%s3] sm:$0xff] %v126
  %135 = vst [vmem:[%s3 + $0x8] sm:$0xff] %v127
  %136 = vst [vmem:[%s3 + $0x10] sm:$0xff] %v128
  %137 = vst [vmem:[%s3 + $0x18] sm:$0xff] %v129
  // Predicated region
  $region14: #{_lambda_.8} parent=0 // pred_check
    _
  $region15: #{_lambda_.8} parent=0 // pred_check_branch
    %139 = sbr.rel (0) target = $region17
  $region16: #{_lambda_.8} parent=0 // pred_region
    _
  $region17: #{_lambda_.8} parent=0 // pred_fallthru
    _
  // Predicated region
  $region18: #{_lambda_.8} parent=0 // pred_check
    _
  $region19: #{_lambda_.8} parent=0 // pred_check_branch
    %141 = sbr.rel (0) target = $region21
  $region20: #{_lambda_.8} parent=0 // pred_region
    _
  $region21: #{_lambda_.8} parent=0 // pred_fallthru
    _

// kernel: _lambda_.9
$region0: #{_lambda_.9}
  #allocation0 [shape = 'u32[]', space=smem, size = 0x4, offset = 0x4, fixed_abs, tag = 'smem constant byte address 0x4 - core index']
  #allocation1 [shape = 'u32[144,128]{1,0:T(1,128)}', space=vmem, size = 0x12000, scoped, tag = 'internal scratch']
  %s0 = inlined_call_operand.vmem [shape: bf16[72,1152], index: 0, kind: input, shape index: {}]
  %s1 = inlined_call_operand.vmem [shape: bf16[3,72], index: 1, kind: input, shape index: {}]
  %s2 = inlined_call_operand.vmem [shape: f32[3,1], index: 2, kind: input, shape index: {}]
  %s3 = inlined_call_operand.vmem [shape: f32[3,1152], index: 3, kind: output, shape index: {}]
  %s4 = sld [smem:[#allocation0]]
  $region71: #{_lambda_.9} parent=0
    _
  %s6 = ssub.s32 1, %s4
  %s7 = scalar_select 0, %s6, %s4
  $region1: #{_lambda_.9} parent=0
    #allocation2 [shape = 'u8[110592]{0}', space=vmem, size = 0x1b000, scoped, tag = 'input window, operand 0']
    loop: start=0, step=1, limit=5
    $region2: #{_lambda_.9} parent=1 // loop_pre_header
      _
    $region3: #{_lambda_.9} parent=1 // loop_header
      %s9 = sphi 0, %s13
      %p10 = scmp.ge.s32.totalorder %s9, 5
      %s19 = sphi 0, %s21
      %s22 = sphi 0, %s19
      %s23 = sphi 0, %s22
      %s39 = sphi 0, %s23
      %s43 = sphi 0, %s43
      %s45 = sphi 0, %s43
      %s46 = sphi 0, %s45
      %s60 = sphi 0, %s46
      %s64 = sphi 0, %s64
      %s66 = sphi 0, %s64
      %s67 = sphi 0, %s66
      %s81 = sphi 0, %s67
      %s87 = sphi 0, %s89
      %s90 = sphi 0, %s87
      %s91 = sphi 0, %s90
      %s107 = sphi 0, %s91
    $region4: #{_lambda_.9} parent=1 // loop_header_branch
      %12 = sbr.rel (%p10) target = $region8
    $region5: #{_lambda_.9} parent=1 // loop_body
      %s14 = ssub.s32 %s9, 1
      %s15 = ssub.s32 %s9, 2
      %s16 = sadd.s32 %s9, 1
      %s17 = ssub.s32 %s9, %s16
      %p18 = scmp.eq.s32.totalorder %s17, 0
      %s20 = sadd.s32 %s19, 1
      %s21 = scalar_select %p18, %s19, %s20
      %p24 = pneg %p18
      %p25 = scmp.eq.s32.totalorder %s9, 2
      %p26 = por %p24, %p25
      %p27 = scmp.ne.s32.totalorder %s19, %s22
      %p28 = scmp.eq.s32.totalorder %s9, 0
      %p29 = por %p27, %p28
      %p30 = scmp.ne.s32.totalorder %s19, %s22
      %p31 = scmp.eq.s32.totalorder %s14, 2
      %p32 = por %p30, %p31
      %p33 = scmp.ne.s32.totalorder %s22, %s23
      %p34 = scmp.eq.s32.totalorder %s14, 0
      %p35 = por %p33, %p34
      %p36 = scmp.ne.s32.totalorder %s22, %s23
      %p37 = scmp.eq.s32.totalorder %s15, 2
      %p38 = por %p36, %p37
      %p40 = scmp.ne.s32.totalorder %s23, %s39
      %p41 = scmp.eq.s32.totalorder %s15, 0
      %p42 = por %p40, %p41
      %s44 = sadd.s32 %s43, 1
      %p47 = scmp.eq.s32.totalorder %s9, 2
      %p48 = scmp.ne.s32.totalorder %s43, %s45
      %p49 = scmp.eq.s32.totalorder %s9, 0
      %p50 = por %p48, %p49
      %p51 = scmp.ne.s32.totalorder %s43, %s45
      %p52 = scmp.eq.s32.totalorder %s14, 2
      %p53 = por %p51, %p52
      %p54 = scmp.ne.s32.totalorder %s45, %s46
      %p55 = scmp.eq.s32.totalorder %s14, 0
      %p56 = por %p54, %p55
      %p57 = scmp.ne.s32.totalorder %s45, %s46
      %p58 = scmp.eq.s32.totalorder %s15, 2
      %p59 = por %p57, %p58
      %p61 = scmp.ne.s32.totalorder %s46, %s60
      %p62 = scmp.eq.s32.totalorder %s15, 0
      %p63 = por %p61, %p62
      %s65 = sadd.s32 %s64, 1
      %p68 = scmp.eq.s32.totalorder %s9, 2
      %p69 = scmp.ne.s32.totalorder %s64, %s66
      %p70 = scmp.eq.s32.totalorder %s9, 0
      %p71 = por %p69, %p70
      %p72 = scmp.ne.s32.totalorder %s64, %s66
      %p73 = scmp.eq.s32.totalorder %s14, 2
      %p74 = por %p72, %p73
      %p75 = scmp.ne.s32.totalorder %s66, %s67
      %p76 = scmp.eq.s32.totalorder %s14, 0
      %p77 = por %p75, %p76
      %p78 = scmp.ne.s32.totalorder %s66, %s67
      %p79 = scmp.eq.s32.totalorder %s15, 2
      %p80 = por %p78, %p79
      %p82 = scmp.ne.s32.totalorder %s67, %s81
      %p83 = scmp.eq.s32.totalorder %s15, 0
      %p84 = por %p82, %p83
      %s85 = ssub.s32 %s9, %s16
      %p86 = scmp.eq.s32.totalorder %s85, 0
      %s88 = sadd.s32 %s87, 1
      %s89 = scalar_select %p86, %s87, %s88
      %p92 = pneg %p86
      %p93 = scmp.eq.s32.totalorder %s9, 2
      %p94 = por %p92, %p93
      %p95 = scmp.ne.s32.totalorder %s87, %s90
      %p96 = scmp.eq.s32.totalorder %s9, 0
      %p97 = por %p95, %p96
      %p98 = scmp.ne.s32.totalorder %s87, %s90
      %p99 = scmp.eq.s32.totalorder %s14, 2
      %p100 = por %p98, %p99
      %p101 = scmp.ne.s32.totalorder %s90, %s91
      %p102 = scmp.eq.s32.totalorder %s14, 0
      %p103 = por %p101, %p102
      %p104 = scmp.ne.s32.totalorder %s90, %s91
      %p105 = scmp.eq.s32.totalorder %s15, 2
      %p106 = por %p104, %p105
      %p108 = scmp.ne.s32.totalorder %s91, %s107
      %p109 = scmp.eq.s32.totalorder %s15, 0
      %p110 = por %p108, %p109
      %p111 = scmp.le.s32.totalorder 1, %s9
      %p112 = scmp.lt.s32.totalorder %s9, 4
      %p113 = pnand %p111, %p112
      %p114 = pneg %p113
      // Predicated region
      $region9: #{_lambda_.9} parent=5 // pred_check
        _
      $region10: #{_lambda_.9} parent=5 // pred_check_branch
        %116 = sbr.rel (%p113) target = $region12
      $region11: #{_lambda_.9} parent=5 // pred_region
        %s117 = ssub.s32 %s9, 1
        // Predicated region
        $region13: #{_lambda_.9} parent=11 // pred_check
          %p118 = pneg %p56
        $region14: #{_lambda_.9} parent=11 // pred_check_branch
          %120 = sbr.rel (%p118) target = $region16
        $region15: #{_lambda_.9} parent=11 // pred_region
          _
        $region16: #{_lambda_.9} parent=11 // pred_fallthru
          _
        // Predicated region
        $region17: #{_lambda_.9} parent=11 // pred_check
          %p121 = pneg %p77
        $region18: #{_lambda_.9} parent=11 // pred_check_branch
          %123 = sbr.rel (%p121) target = $region20
        $region19: #{_lambda_.9} parent=11 // pred_region
          _
        $region20: #{_lambda_.9} parent=11 // pred_fallthru
          _
      $region12: #{_lambda_.9} parent=5 // pred_fallthru
        _
      %p124 = scmp.lt.s32.totalorder %s9, 3
      // Predicated region
      $region21: #{_lambda_.9} parent=5 // pred_check
        %p125 = pneg %p124
      $region22: #{_lambda_.9} parent=5 // pred_check_branch
        %127 = sbr.rel (%p125) target = $region24
      $region23: #{_lambda_.9} parent=5 // pred_region
        // Predicated region
        $region25: #{_lambda_.9} parent=23 // pred_check
          %p128 = pneg %p29
        $region26: #{_lambda_.9} parent=23 // pred_check_branch
          %130 = sbr.rel (%p128) target = $region28
        $region27: #{_lambda_.9} parent=23 // pred_region
          %s131 = sand.u32 %s19, 1
          %s132 = sand.u32 %s19, 1
          %s133 = smul.addr %s132, 108
          %s134 = scalar_lea.vmem [#allocation2], %s133
          %s135 = smul.u32 3, %s9
          %s136 = smul.addr %s135, 4
          %s137 = scalar_lea.vmem %s0, %s136
          // Predicated region
          $region29: #{_lambda_.9} parent=27 // pred_check
            _
          $region30: #{_lambda_.9} parent=27 // pred_check_branch
            %139 = sbr.rel (0) target = $region32
          $region31: #{_lambda_.9} parent=27 // pred_region
            // Predicated region
            $region33: #{_lambda_.9} parent=31 // pred_check
              _
            $region34: #{_lambda_.9} parent=31 // pred_check_branch
              %141 = sbr.rel (0) target = $region36
            $region35: #{_lambda_.9} parent=31 // pred_region
              %s142 = scalar_lea.vmem %s137, 8
              %s143 = scalar_lea.vmem %s134, 8 [#allocation2]
              loop: start=0, step=1, limit=1
              $region37: #{_lambda_.9} parent=35 // loop_pre_header
                _
              $region38: #{_lambda_.9} parent=35 // loop_header
                %s145 = sphi 0, %s149
                %p146 = scmp.ge.s32.totalorder %s145, 1
                %s150 = sphi %s137, %s137
                %s151 = sphi %s134, %s134
              $region39: #{_lambda_.9} parent=35 // loop_header_branch
                %148 = sbr.rel (%p146) target = $region43
              $region40: #{_lambda_.9} parent=35 // loop_body
                %v152 = vld [vmem:[%s150] sm:$0xff]
                %153 = vst [vmem:[%s151] sm:$0xff] %v152
                %v154 = vld [vmem:[%s150 + $0x24] sm:$0xff]
                %155 = vst [vmem:[%s151 + $0xc] sm:$0xff] %v154
                %v156 = vld [vmem:[%s150 + $0x48] sm:$0xff]
                %157 = vst [vmem:[%s151 + $0x18] sm:$0xff] %v156
                %v158 = vld [vmem:[%s150 + $0x6c] sm:$0xff]
                %159 = vst [vmem:[%s151 + $0x24] sm:$0xff] %v158
                %v160 = vld [vmem:[%s150 + $0x90] sm:$0xff]
                %161 = vst [vmem:[%s151 + $0x30] sm:$0xff] %v160
                %v162 = vld [vmem:[%s150 + $0xb4] sm:$0xff]
                %163 = vst [vmem:[%s151 + $0x3c] sm:$0xff] %v162
                %v164 = vld [vmem:[%s150 + $0xd8] sm:$0xff]
                %165 = vst [vmem:[%s151 + $0x48] sm:$0xff] %v164
                %v166 = vld [vmem:[%s150 + $0xfc] sm:$0xff]
                %167 = vst [vmem:[%s151 + $0x54] sm:$0xff] %v166
                %v168 = vld [vmem:[%s150 + $0x120] sm:$0xff]
                %169 = vst [vmem:[%s151 + $0x60] sm:$0xff] %v168
              $region41: #{_lambda_.9} parent=35 // loop_footer
                %s149 = sadd.s32 1, %s145
              $region42: #{_lambda_.9} parent=35 // loop_footer_branch
                %144 = sbr.rel target = $region38
              $region43: #{_lambda_.9} parent=35 // loop_exit
                _
              loop: start=0, step=1, limit=1
              $region44: #{_lambda_.9} parent=35 // loop_pre_header
                _
              $region45: #{_lambda_.9} parent=35 // loop_header
                %s172 = sphi 0, %s176
                %p173 = scmp.ge.s32.totalorder %s172, 1
                %s177 = sphi %s142, %s142
                %s178 = sphi %s143, %s143
              $region46: #{_lambda_.9} parent=35 // loop_header_branch
                %175 = sbr.rel (%p173) target = $region50
              $region47: #{_lambda_.9} parent=35 // loop_body
                %v179 = vld [vmem:[%s177] sm:$0xf]
                %180 = vst [vmem:[%s178] sm:$0xf] %v179
                %v181 = vld [vmem:[%s177 + $0x24] sm:$0xf]
                %182 = vst [vmem:[%s178 + $0xc] sm:$0xf] %v181
                %v183 = vld [vmem:[%s177 + $0x48] sm:$0xf]
                %184 = vst [vmem:[%s178 + $0x18] sm:$0xf] %v183
                %v185 = vld [vmem:[%s177 + $0x6c] sm:$0xf]
                %186 = vst [vmem:[%s178 + $0x24] sm:$0xf] %v185
                %v187 = vld [vmem:[%s177 + $0x90] sm:$0xf]
                %188 = vst [vmem:[%s178 + $0x30] sm:$0xf] %v187
                %v189 = vld [vmem:[%s177 + $0xb4] sm:$0xf]
                %190 = vst [vmem:[%s178 + $0x3c] sm:$0xf] %v189
                %v191 = vld [vmem:[%s177 + $0xd8] sm:$0xf]
                %192 = vst [vmem:[%s178 + $0x48] sm:$0xf] %v191
                %v193 = vld [vmem:[%s177 + $0xfc] sm:$0xf]
                %194 = vst [vmem:[%s178 + $0x54] sm:$0xf] %v193
                %v195 = vld [vmem:[%s177 + $0x120] sm:$0xf]
                %196 = vst [vmem:[%s178 + $0x60] sm:$0xf] %v195
              $region48: #{_lambda_.9} parent=35 // loop_footer
                %s176 = sadd.s32 1, %s172
              $region49: #{_lambda_.9} parent=35 // loop_footer_branch
                %171 = sbr.rel target = $region45
              $region50: #{_lambda_.9} parent=35 // loop_exit
                _
            $region36: #{_lambda_.9} parent=31 // pred_fallthru
              _
          $region32: #{_lambda_.9} parent=27 // pred_fallthru
            _
          %197 = vnop
        $region28: #{_lambda_.9} parent=23 // pred_fallthru
          _
      $region24: #{_lambda_.9} parent=5 // pred_fallthru
        _
      %p198 = scmp.le.s32.totalorder 1, %s9
      %p199 = scmp.lt.s32.totalorder %s9, 4
      %p200 = pnand %p198, %p199
      %p201 = pneg %p200
      // Predicated region
      $region51: #{_lambda_.9} parent=5 // pred_check
        _
      $region52: #{_lambda_.9} parent=5 // pred_check_branch
        %203 = sbr.rel (%p200) target = $region54
      $region53: #{_lambda_.9} parent=5 // pred_region
        %s204 = ssub.s32 %s9, 1
        %s205 = sand.u32 %s22, 1
        %s206 = sand.u32 %s22, 1
        %s207 = smul.addr %s206, 108
        %s208 = scalar_lea.vmem [#allocation2], %s207
        // Predicated region
        $region55: #{_lambda_.9} parent=53 // pred_check
          %p209 = pneg %p35
        $region56: #{_lambda_.9} parent=53 // pred_check_branch
          %211 = sbr.rel (%p209) target = $region58
        $region57: #{_lambda_.9} parent=53 // pred_region
          _
        $region58: #{_lambda_.9} parent=53 // pred_fallthru
          _
        %s212 = sand.u32 %s22, 1
        %s213 = sand.u32 %s22, 1
        %s214 = smul.addr %s213, 108
        %s215 = scalar_lea.vmem [#allocation2], %s214
        %p216 = pneg %p35
        %p217 = pneg %p32
        %p218 = pneg %p56
        %p219 = pneg %p53
        %p220 = pneg %p77
        %p221 = pneg %p74
        %p222 = pneg %p103
        %p223 = pneg %p100
        %s224 = smul.u32 3, %s14
        %p225 = scmp.lt.s32.totalorder %s224, 8
        %s226 = scalar_select %p225, %s224, 8
        %s227 = smul.addr %s226, 4
        %s228 = scalar_lea.vmem %s3, %s227
        %s229 = smul.u32 3, %s14
        %s230 = smul.u32 3, %s14
        %p231 = scmp.lt.s32.totalorder %s230, 8
        %s232 = scalar_select %p231, %s230, 8
        %s233 = smul.addr %s232, 4
        %s234 = scalar_lea.vmem %s3, %s233
        %s235 = smul.u32 3, %s14
        %v237 = vld [vmem:[%s1] sm:$0x3]
        %v238 = vld [vmem:[%s208] sm:$0xff]
        %v239 = vld [vmem:[%s208 + $0x8] sm:$0xf]
        %v240 = vld [vmem:[%s208 + $0xc] sm:$0xff]
        %v241 = vld [vmem:[%s208 + $0x14] sm:$0xf]
        %v242 = vld [vmem:[%s208 + $0x18] sm:$0xff]
        %v243 = vld [vmem:[%s208 + $0x20] sm:$0xf]
        %v244 = vld [vmem:[%s208 + $0x24] sm:$0xff]
        %v245 = vld [vmem:[%s208 + $0x2c] sm:$0xf]
        %v246 = vld [vmem:[%s208 + $0x30] sm:$0xff]
        %v247 = vld [vmem:[%s208 + $0x38] sm:$0xf]
        %v248 = vld [vmem:[%s208 + $0x3c] sm:$0xff]
        %v249 = vld [vmem:[%s208 + $0x44] sm:$0xf]
        %v250 = vld [vmem:[%s208 + $0x48] sm:$0xff]
        %v251 = vld [vmem:[%s208 + $0x50] sm:$0xf]
        %v252 = vld [vmem:[%s208 + $0x54] sm:$0xff]
        %v253 = vld [vmem:[%s208 + $0x5c] sm:$0xf]
        %v254 = vld [vmem:[%s208 + $0x60] sm:$0xff]
        %v255 = vld [vmem:[%s208 + $0x68] sm:$0xf]
        %v256 = vld [vmem:[%s2] sm:$0x7]
        %258 = vset.pattern.permute.xlu0 0
        %259 = vperm.xlu0 %258, %v256
        %v260 = vpop.permute.xlu0 %259
        %v280 = vunpack.c.l.b16 %v238
        %v281 = vunpack.c.h.b16 %v238
        %v282 = vunpack.c.l.b16 %v239
        %v283 = vunpack.c.l.b16 %v240
        %v284 = vunpack.c.h.b16 %v240
        %v285 = vunpack.c.l.b16 %v241
        %v286 = vunpack.c.l.b16 %v242
        %v287 = vunpack.c.h.b16 %v242
        %v288 = vunpack.c.l.b16 %v243
        %v289 = vunpack.c.l.b16 %v244
        %v290 = vunpack.c.h.b16 %v244
        %v291 = vunpack.c.l.b16 %v245
        %v292 = vunpack.c.l.b16 %v246
        %v293 = vunpack.c.h.b16 %v246
        %v294 = vunpack.c.l.b16 %v247
        %v295 = vunpack.c.l.b16 %v248
        %v296 = vunpack.c.h.b16 %v248
        %v297 = vunpack.c.l.b16 %v249
        %v298 = vunpack.c.l.b16 %v250
        %v299 = vunpack.c.h.b16 %v250
        %v300 = vunpack.c.l.b16 %v251
        %v301 = vunpack.c.l.b16 %v252
        %v302 = vunpack.c.h.b16 %v252
        %v303 = vunpack.c.l.b16 %v253
        %v304 = vunpack.c.l.b16 %v254
        %v305 = vunpack.c.h.b16 %v254
        %v306 = vunpack.c.l.b16 %v255
        %v307 = vpack.c.b16 %v283, %v280
        %v308 = vpack.c.b16 %v284, %v281
        %v309 = vpack.c.b16 %v285, %v282
        %v310 = vpack.c.b16 %v289, %v286
        %v311 = vpack.c.b16 %v290, %v287
        %v312 = vpack.c.b16 %v291, %v288
        %v313 = vpack.c.b16 %v295, %v292
        %v314 = vpack.c.b16 %v296, %v293
        %v315 = vpack.c.b16 %v297, %v294
        %v316 = vpack.c.b16 %v301, %v298
        %v317 = vpack.c.b16 %v302, %v299
        %v318 = vpack.c.b16 %v303, %v300
        %v319 = vpack.c.b16 %v304, %v304
        %v320 = vpack.c.b16 %v305, %v305
        %v321 = vpack.c.b16 %v306, %v306
        %vm334 = vcmask 588800
        %v336 = vsel %vm334, %v237, 0
        %vm338 = vcmask 1043456
        %v340 = vsel %vm338, %v319, 0
        %v343 = vsel %vm338, %v320, 0
        %v346 = vsel %vm338, %v321, 0
        %348 = vmatprep.subr.bf16.mxu0 %v308
        %349 = vmatpush1.bf16.msra.mxu0 %v307
        %350 = vmatprep.subr.bf16.mxu0 %v311
        %351 = vmatpush1.bf16.msra.mxu0 %v310
        %352 = vmatprep.subr.bf16.mxu0 %v314
        %353 = vmatpush1.bf16.msra.mxu0 %v313
        %354 = vmatprep.subr.bf16.mxu0 %v317
        %355 = vmatpush1.bf16.msra.mxu0 %v316
        %356 = vmatprep.subr.bf16.mxu0 %v343
        %357 = vmatpush1.bf16.msra.mxu0 %v340
        %358 = vmatprep.subr.bf16.mxu0 0
        %359 = vmatpush1.bf16.msra.mxu0 0
        %360 = vmatprep.subr.bf16.mxu0 0
        %361 = vmatpush1.bf16.msra.mxu0 0
        %362 = vmatprep.subr.bf16.mxu0 0
        %363 = vmatpush1.bf16.msra.mxu0 0
        %364 = vmatprep.subr.bf16.mxu0 0
        %365 = vmatpush1.bf16.msra.mxu0 0
        %366 = vmatprep.subr.bf16.mxu0 0
        %367 = vmatpush1.bf16.msra.mxu0 0
        %368 = vmatprep.subr.bf16.mxu0 0
        %369 = vmatpush1.bf16.msra.mxu0 0
        %370 = vmatprep.subr.bf16.mxu0 0
        %371 = vmatpush1.bf16.msra.mxu0 0
        %372 = vmatprep.subr.bf16.mxu0 0
        %373 = vmatpush1.bf16.msra.mxu0 0
        %374 = vmatprep.subr.bf16.mxu0 0
        %375 = vmatpush1.bf16.msra.mxu0 0
        %376 = vmatprep.subr.bf16.mxu0 0
        %377 = vmatpush1.bf16.msra.mxu0 0
        %378 = vmatprep.subr.bf16.mxu0 0
        %379 = vmatpush1.bf16.msra.mxu0 0
        %380 = vmatprep.mubr.bf16.mxu0 0
        %381 = vmatmul.mubr.bf16.gmra.mrb[0].mxu0 %v336
        %v382 = vpop.f32.mrb[0].mxu0
        %v383 = vadd.f32 %v260, %v382
        %v384 = vpop.f32.mrb[0].mxu0
        %v385 = vadd.f32 %v260, %v384
        %v386 = vpop.f32.mrb[0].mxu0
        %v387 = vpop.f32.mrb[0].mxu0
        %388 = vdwg.mxu0
        %389 = vmatprep.subr.bf16.mxu0 0
        %390 = vmatpush1.bf16.msra.mxu0 %v309
        %391 = vmatprep.subr.bf16.mxu0 0
        %392 = vmatpush1.bf16.msra.mxu0 %v312
        %393 = vmatprep.subr.bf16.mxu0 0
        %394 = vmatpush1.bf16.msra.mxu0 %v315
        %395 = vmatprep.subr.bf16.mxu0 0
        %396 = vmatpush1.bf16.msra.mxu0 %v318
        %397 = vmatprep.subr.bf16.mxu0 0
        %398 = vmatpush1.bf16.msra.mxu0 %v346
        %399 = vmatprep.subr.bf16.mxu0 0
        %400 = vmatpush1.bf16.msra.mxu0 0
        %401 = vmatprep.subr.bf16.mxu0 0
        %402 = vmatpush1.bf16.msra.mxu0 0
        %403 = vmatprep.subr.bf16.mxu0 0
        %404 = vmatpush1.bf16.msra.mxu0 0
        %405 = vmatprep.subr.bf16.mxu0 0
        %406 = vmatpush1.bf16.msra.mxu0 0
        %407 = vmatprep.subr.bf16.mxu0 0
        %408 = vmatpush1.bf16.msra.mxu0 0
        %409 = vmatprep.subr.bf16.mxu0 0
        %410 = vmatpush1.bf16.msra.mxu0 0
        %411 = vmatprep.subr.bf16.mxu0 0
        %412 = vmatpush1.bf16.msra.mxu0 0
        %413 = vmatprep.subr.bf16.mxu0 0
        %414 = vmatpush1.bf16.msra.mxu0 0
        %415 = vmatprep.subr.bf16.mxu0 0
        %416 = vmatpush1.bf16.msra.mxu0 0
        %417 = vmatprep.subr.bf16.mxu0 0
        %418 = vmatpush1.bf16.msra.mxu0 0
        %419 = vmatprep.subr.bf16.mxu0 0
        %420 = vmatpush1.bf16.msra.mxu0 0
        %421 = vmatprep.mubr.bf16.mxu0 0
        %422 = vmatmul.mubr.bf16.gmra.mrb[0].mxu0 %v336
        %v423 = vpop.f32.mrb[0].mxu0
        %v424 = vadd.f32 %v260, %v423
        %v425 = vpop.f32.mrb[0].mxu0
        %v426 = vpop.f32.mrb[0].mxu0
        %v427 = vpop.f32.mrb[0].mxu0
        %428 = vdwg.mxu0
        %v429 = vtanh.pop %v383
        %v430 = vtanh.pop %v385
        %v431 = vtanh.pop %v424
        %v434 = vcombine.low %v429, %v430
        %436 = vst [vmem:[%s234] sm:$0x77] %v434
        %437 = vst [vmem:[%s234 + $0x8] sm:$0x7] %v431
        %s438 = smul.u32 3, %s14
        %p439 = scmp.lt.s32.totalorder %s438, 8
        %s440 = scalar_select %p439, %s438, 8
        %s441 = smul.addr %s440, 4
        %s442 = scalar_lea.vmem %s3, %s441
        // Predicated region
        $region59: #{_lambda_.9} parent=53 // pred_check
          %p443 = pneg %p100
        $region60: #{_lambda_.9} parent=53 // pred_check_branch
          %445 = sbr.rel (%p443) target = $region62
        $region61: #{_lambda_.9} parent=53 // pred_region
          %s446 = smul.u32 3, %s14
        $region62: #{_lambda_.9} parent=53 // pred_fallthru
          _
      $region54: #{_lambda_.9} parent=5 // pred_fallthru
        _
      %p447 = scmp.le.s32.totalorder 2, %s9
      // Predicated region
      $region63: #{_lambda_.9} parent=5 // pred_check
        %p448 = pneg %p447
      $region64: #{_lambda_.9} parent=5 // pred_check_branch
        %450 = sbr.rel (%p448) target = $region66
      $region65: #{_lambda_.9} parent=5 // pred_region
        %s451 = ssub.s32 %s9, 2
        // Predicated region
        $region67: #{_lambda_.9} parent=65 // pred_check
          %p452 = pneg %p106
        $region68: #{_lambda_.9} parent=65 // pred_check_branch
          %454 = sbr.rel (%p452) target = $region70
        $region69: #{_lambda_.9} parent=65 // pred_region
          %s455 = smul.u32 3, %s15
          %p456 = scmp.lt.s32.totalorder %s455, 8
          %s457 = scalar_select %p456, %s455, 8
          %s458 = smul.addr %s457, 4
          %s459 = scalar_lea.vmem %s3, %s458
        $region70: #{_lambda_.9} parent=65 // pred_fallthru
          _
      $region66: #{_lambda_.9} parent=5 // pred_fallthru
        _
    $region6: #{_lambda_.9} parent=1 // loop_footer
      %s13 = sadd.s32 1, %s9
    $region7: #{_lambda_.9} parent=1 // loop_footer_branch
      %8 = sbr.rel target = $region3
    $region8: #{_lambda_.9} parent=1 // loop_exit
      _

</llo_original>
